<compile_context>
chip_gen: v5e
topology: v5e:2x2
jax: 0.10.0
libtpu: 0.0.40
codegen_flags: <defaults>
</compile_context>

<pallas_src>
import functools

import jax
import jax.numpy as jnp
from jax.experimental import pallas as pl
from jax.experimental.pallas import tpu as pltpu

K = 7
PAD = K // 2


def _round_up(v, m):
    return (v + m - 1) // m * m


def sam_kernel(x_ref, w_ref, b_ref, o_ref, *, C, W, HWp):
    # x_ref / o_ref: (Bt, C*HWp)  VMEM  (lane axis; each channel is a 128-aligned slice)
    # w_ref:         (2*K*K,)     f32 SMEM, flattened [max-plane | avg-plane]
    # b_ref:         (1,)         f32 SMEM
    Bt = x_ref.shape[0]
    f32 = jnp.float32

    # ---- fused single-pass channel max + sum (each channel read once) -------
    x0 = x_ref[:, 0:HWp].astype(f32)                # (Bt, HWp)
    mx, sm = x0, x0
    for c in range(1, C):
        xc = x_ref[:, c * HWp:(c + 1) * HWp].astype(f32)
        mx = jnp.maximum(mx, xc)
        sm = sm + xc
    av = sm * (1.0 / C)

    # ---- 7x7 "same" conv over the two pooled planes, in flat (H*W) layout ----
    # A 2-D tap (kh, kw) is a flat shift by (kh-PAD)*W + (kw-PAD).  Lane-aligned
    # zero flanks of PADF columns on both sides make every vertically
    # out-of-range tap read zeros; horizontal wrap across image rows is killed
    # by a hoisted per-kw column-validity mask, applied once per kw column
    # (shared by both planes), not per tap.
    PADF = _round_up(PAD * W + PAD, 128)
    zflank = jnp.zeros((Bt, PADF), f32)
    planes = (jnp.concatenate([zflank, mx, zflank], axis=1),
              jnp.concatenate([zflank, av, zflank], axis=1))

    pos = jax.lax.broadcasted_iota(jnp.int32, (1, HWp), 1)
    if W & (W - 1) == 0:                            # power of two -> cheap bit op
        col = pos & (W - 1)
    else:
        col = pos % W

    acc = jnp.full((Bt, HWp), b_ref[0], f32)
    for kw in range(K):
        dw = kw - PAD
        part = None
        for p in range(2):                          # 0: max-plane, 1: avg-plane
            for kh in range(K):
                dh = kh - PAD
                start = PADF + dh * W + dw          # static slice start
                tap = planes[p][:, start:start + HWp]
                contrib = w_ref[p * K * K + kh * K + kw] * tap
                part = contrib if part is None else part + contrib
        if dw != 0:                                 # kill row-wrap once per kw
            ok = jnp.logical_and(col + dw >= 0, col + dw < W)
            part = jnp.where(ok, part, 0.0)
        acc = acc + part

    attn = jax.nn.sigmoid(acc)                      # (Bt, HWp) f32

    # ---- broadcast multiply over channels, full-lane (unmasked) stores -------
    for c in range(C):
        xc = x_ref[:, c * HWp:(c + 1) * HWp].astype(f32)
        o_ref[:, c * HWp:(c + 1) * HWp] = (xc * attn).astype(o_ref.dtype)


def sam_forward(x, weight, bias):
    """x: (N,C,H,W), weight: (1,2,K,K), bias: (1,).  Returns (N,C,H,W)."""
    N, C, H, W = x.shape
    HW = H * W
    HWp = _round_up(HW, 128)

    x_flat = x.reshape(N, C, HW)
    if HWp != HW:
        x_flat = jnp.pad(x_flat, ((0, 0), (0, 0), (0, HWp - HW)))
    x2 = x_flat.reshape(N, C * HWp)                     # lane-dense 2-D layout

    w_flat = weight.reshape(-1).astype(jnp.float32)     # (2*K*K,)
    b_flat = bias.reshape(-1).astype(jnp.float32)       # (1,)

    # Batch tile: largest power-of-two divisor of N (<= 8) whose double-buffered
    # x/out tiles fit comfortably in VMEM; amortizes per-grid-step overhead.
    bt = 8 if N % 8 == 0 else 4 if N % 4 == 0 else 2 if N % 2 == 0 else 1
    itemsize = jnp.dtype(x.dtype).itemsize
    while bt > 1 and 5 * bt * C * HWp * itemsize > 24 * 1024 * 1024:
        bt //= 2
    block_bytes = bt * C * HWp * itemsize
    vmem_limit = int(min(64 * 2**20, max(16 * 2**20, 6 * block_bytes)))

    kernel = functools.partial(sam_kernel, C=C, W=W, HWp=HWp)

    out2 = pl.pallas_call(
        kernel,
        out_shape=jax.ShapeDtypeStruct((N, C * HWp), x.dtype),
        grid=(N // bt,),
        in_specs=[
            pl.BlockSpec((bt, C * HWp), lambda n: (n, 0)),
            pl.BlockSpec(memory_space=pltpu.MemorySpace.SMEM),
            pl.BlockSpec(memory_space=pltpu.MemorySpace.SMEM),
        ],
        out_specs=pl.BlockSpec((bt, C * HWp), lambda n: (n, 0)),
        compiler_params=pltpu.CompilerParams(
            dimension_semantics=("parallel",),
            vmem_limit_bytes=vmem_limit,
        ),
    )(x2, w_flat, b_flat)

    out = out2.reshape(N, C, HWp)[:, :, :HW].reshape(N, C, H, W)
    return out


def sam_reference(x, weight, bias):
    """Pure-JAX reference matching the PyTorch module."""
    max_p = jnp.max(x, axis=1, keepdims=True)
    avg_p = jnp.mean(x, axis=1, keepdims=True)
    pooled = jnp.concatenate([max_p, avg_p], axis=1)
    conv = jax.lax.conv_general_dilated(
        pooled, weight, window_strides=(1, 1),
        padding=[(PAD, PAD), (PAD, PAD)],
        dimension_numbers=("NCHW", "OIHW", "NCHW"),
    ) + bias.reshape(1, 1, 1, 1)
    return x * jax.nn.sigmoid(conv)


if __name__ == "__main__":
    key = jax.random.PRNGKey(0)
    kx, kw, kb = jax.random.split(key, 3)

    N, C, H, W = 2, 4, 16, 16
    x = jax.random.normal(kx, (N, C, H, W), dtype=jnp.float32)

    # Deterministic Conv2d(2, 1, 7, padding=3) params (PyTorch-style uniform bound).
    fan_in = 2 * K * K
    bound = 1.0 / jnp.sqrt(jnp.float32(fan_in))
    weight = jax.random.uniform(kw, (1, 2, K, K), jnp.float32, -bound, bound)
    bias = jax.random.uniform(kb, (1,), jnp.float32, -bound, bound)

    out = sam_forward(x, weight, bias)
    out = jax.block_until_ready(out)

    ref = sam_reference(x, weight, bias)
    assert out.shape == (N, C, H, W)
    assert jnp.allclose(out, ref, atol=1e-4, rtol=1e-4), "mismatch vs reference"

    print("KERNEL_OK")
</pallas_src>

<mosaic_0001>
module attributes {stable_mosaic.version = 11 : i64} {
  func.func @sam_kernel(%arg0: i32, %arg1: memref<2x1024xf32, #tpu.memory_space<vmem>>, %arg2: memref<98xf32, #tpu.memory_space<smem>>, %arg3: memref<1xf32, #tpu.memory_space<smem>>, %arg4: memref<2x1024xf32, #tpu.memory_space<vmem>>) attributes {dimension_semantics = [#tpu.dimension_semantics<parallel>], iteration_bounds = array<i64: 1>, scalar_prefetch = 0 : i64, scratch_operands = 0 : i64, tpu.core_type = #tpu.core_type<tc>, window_params = [{transform_indices = @transform_0, window_bounds = array<i64: 2, 1024>}, {transform_indices = @transform_1, window_bounds = array<i64: 98>}, {transform_indices = @transform_2, window_bounds = array<i64: 1>}, {transform_indices = @transform_3, window_bounds = array<i64: 2, 1024>}]} {
    %c0 = arith.constant 0 : index
    %c0_0 = arith.constant 0 : index
    %0 = vector.load %arg1[%c0, %c0_0] : memref<2x1024xf32, #tpu.memory_space<vmem>>, vector<2x256xf32>
    %c0_1 = arith.constant 0 : index
    %c256 = arith.constant 256 : index
    %1 = vector.load %arg1[%c0_1, %c256] : memref<2x1024xf32, #tpu.memory_space<vmem>>, vector<2x256xf32>
    %2 = arith.maximumf %0, %1 : vector<2x256xf32>
    %3 = arith.addf %0, %1 : vector<2x256xf32>
    %c0_2 = arith.constant 0 : index
    %c512 = arith.constant 512 : index
    %4 = vector.load %arg1[%c0_2, %c512] : memref<2x1024xf32, #tpu.memory_space<vmem>>, vector<2x256xf32>
    %5 = arith.maximumf %2, %4 : vector<2x256xf32>
    %6 = arith.addf %3, %4 : vector<2x256xf32>
    %c0_3 = arith.constant 0 : index
    %c768 = arith.constant 768 : index
    %7 = vector.load %arg1[%c0_3, %c768] : memref<2x1024xf32, #tpu.memory_space<vmem>>, vector<2x256xf32>
    %8 = arith.maximumf %5, %7 : vector<2x256xf32>
    %9 = arith.addf %6, %7 : vector<2x256xf32>
    %cst = arith.constant 2.500000e-01 : f32
    %10 = vector.broadcast %cst : f32 to vector<2x256xf32>
    %11 = arith.mulf %9, %10 : vector<2x256xf32>
    %cst_4 = arith.constant 0.000000e+00 : f32
    %12 = vector.broadcast %cst_4 : f32 to vector<2x128xf32>
    %13 = tpu.concatenate %12, %8, %12 in 1 : vector<2x128xf32>, vector<2x256xf32>, vector<2x128xf32> -> vector<2x512xf32>
    %14 = tpu.concatenate %12, %11, %12 in 1 : vector<2x128xf32>, vector<2x256xf32>, vector<2x128xf32> -> vector<2x512xf32>
    %15 = tpu.iota {dimensions = array<i32: 1>} : vector<1x256xi32>
    %c15_i32 = arith.constant 15 : i32
    %16 = vector.broadcast %c15_i32 : i32 to vector<1x256xi32>
    %17 = arith.andi %15, %16 : vector<1x256xi32>
    %c0_5 = arith.constant 0 : index
    %18 = memref.load %arg3[%c0_5] : memref<1xf32, #tpu.memory_space<smem>>
    %19 = vector.broadcast %18 : f32 to vector<2x256xf32>
    %20 = vector.extract_strided_slice %13 {offsets = [0, 77], sizes = [2, 256], strides = [1, 1]} : vector<2x512xf32> to vector<2x256xf32>
    %c0_6 = arith.constant 0 : index
    %21 = memref.load %arg2[%c0_6] : memref<98xf32, #tpu.memory_space<smem>>
    %22 = vector.broadcast %21 : f32 to vector<2x256xf32>
    %23 = arith.mulf %22, %20 : vector<2x256xf32>
    %24 = vector.extract_strided_slice %13 {offsets = [0, 93], sizes = [2, 256], strides = [1, 1]} : vector<2x512xf32> to vector<2x256xf32>
    %c7 = arith.constant 7 : index
    %25 = memref.load %arg2[%c7] : memref<98xf32, #tpu.memory_space<smem>>
    %26 = vector.broadcast %25 : f32 to vector<2x256xf32>
    %27 = arith.mulf %26, %24 : vector<2x256xf32>
    %28 = arith.addf %23, %27 : vector<2x256xf32>
    %29 = vector.extract_strided_slice %13 {offsets = [0, 109], sizes = [2, 256], strides = [1, 1]} : vector<2x512xf32> to vector<2x256xf32>
    %c14 = arith.constant 14 : index
    %30 = memref.load %arg2[%c14] : memref<98xf32, #tpu.memory_space<smem>>
    %31 = vector.broadcast %30 : f32 to vector<2x256xf32>
    %32 = arith.mulf %31, %29 : vector<2x256xf32>
    %33 = arith.addf %28, %32 : vector<2x256xf32>
    %34 = vector.extract_strided_slice %13 {offsets = [0, 125], sizes = [2, 256], strides = [1, 1]} : vector<2x512xf32> to vector<2x256xf32>
    %c21 = arith.constant 21 : index
    %35 = memref.load %arg2[%c21] : memref<98xf32, #tpu.memory_space<smem>>
    %36 = vector.broadcast %35 : f32 to vector<2x256xf32>
    %37 = arith.mulf %36, %34 : vector<2x256xf32>
    %38 = arith.addf %33, %37 : vector<2x256xf32>
    %39 = vector.extract_strided_slice %13 {offsets = [0, 141], sizes = [2, 256], strides = [1, 1]} : vector<2x512xf32> to vector<2x256xf32>
    %c28 = arith.constant 28 : index
    %40 = memref.load %arg2[%c28] : memref<98xf32, #tpu.memory_space<smem>>
    %41 = vector.broadcast %40 : f32 to vector<2x256xf32>
    %42 = arith.mulf %41, %39 : vector<2x256xf32>
    %43 = arith.addf %38, %42 : vector<2x256xf32>
    %44 = vector.extract_strided_slice %13 {offsets = [0, 157], sizes = [2, 256], strides = [1, 1]} : vector<2x512xf32> to vector<2x256xf32>
    %c35 = arith.constant 35 : index
    %45 = memref.load %arg2[%c35] : memref<98xf32, #tpu.memory_space<smem>>
    %46 = vector.broadcast %45 : f32 to vector<2x256xf32>
    %47 = arith.mulf %46, %44 : vector<2x256xf32>
    %48 = arith.addf %43, %47 : vector<2x256xf32>
    %49 = vector.extract_strided_slice %13 {offsets = [0, 173], sizes = [2, 256], strides = [1, 1]} : vector<2x512xf32> to vector<2x256xf32>
    %c42 = arith.constant 42 : index
    %50 = memref.load %arg2[%c42] : memref<98xf32, #tpu.memory_space<smem>>
    %51 = vector.broadcast %50 : f32 to vector<2x256xf32>
    %52 = arith.mulf %51, %49 : vector<2x256xf32>
    %53 = arith.addf %48, %52 : vector<2x256xf32>
    %54 = vector.extract_strided_slice %14 {offsets = [0, 77], sizes = [2, 256], strides = [1, 1]} : vector<2x512xf32> to vector<2x256xf32>
    %c49 = arith.constant 49 : index
    %55 = memref.load %arg2[%c49] : memref<98xf32, #tpu.memory_space<smem>>
    %56 = vector.broadcast %55 : f32 to vector<2x256xf32>
    %57 = arith.mulf %56, %54 : vector<2x256xf32>
    %58 = arith.addf %53, %57 : vector<2x256xf32>
    %59 = vector.extract_strided_slice %14 {offsets = [0, 93], sizes = [2, 256], strides = [1, 1]} : vector<2x512xf32> to vector<2x256xf32>
    %c56 = arith.constant 56 : index
    %60 = memref.load %arg2[%c56] : memref<98xf32, #tpu.memory_space<smem>>
    %61 = vector.broadcast %60 : f32 to vector<2x256xf32>
    %62 = arith.mulf %61, %59 : vector<2x256xf32>
    %63 = arith.addf %58, %62 : vector<2x256xf32>
    %64 = vector.extract_strided_slice %14 {offsets = [0, 109], sizes = [2, 256], strides = [1, 1]} : vector<2x512xf32> to vector<2x256xf32>
    %c63 = arith.constant 63 : index
    %65 = memref.load %arg2[%c63] : memref<98xf32, #tpu.memory_space<smem>>
    %66 = vector.broadcast %65 : f32 to vector<2x256xf32>
    %67 = arith.mulf %66, %64 : vector<2x256xf32>
    %68 = arith.addf %63, %67 : vector<2x256xf32>
    %69 = vector.extract_strided_slice %14 {offsets = [0, 125], sizes = [2, 256], strides = [1, 1]} : vector<2x512xf32> to vector<2x256xf32>
    %c70 = arith.constant 70 : index
    %70 = memref.load %arg2[%c70] : memref<98xf32, #tpu.memory_space<smem>>
    %71 = vector.broadcast %70 : f32 to vector<2x256xf32>
    %72 = arith.mulf %71, %69 : vector<2x256xf32>
    %73 = arith.addf %68, %72 : vector<2x256xf32>
    %74 = vector.extract_strided_slice %14 {offsets = [0, 141], sizes = [2, 256], strides = [1, 1]} : vector<2x512xf32> to vector<2x256xf32>
    %c77 = arith.constant 77 : index
    %75 = memref.load %arg2[%c77] : memref<98xf32, #tpu.memory_space<smem>>
    %76 = vector.broadcast %75 : f32 to vector<2x256xf32>
    %77 = arith.mulf %76, %74 : vector<2x256xf32>
    %78 = arith.addf %73, %77 : vector<2x256xf32>
    %79 = vector.extract_strided_slice %14 {offsets = [0, 157], sizes = [2, 256], strides = [1, 1]} : vector<2x512xf32> to vector<2x256xf32>
    %c84 = arith.constant 84 : index
    %80 = memref.load %arg2[%c84] : memref<98xf32, #tpu.memory_space<smem>>
    %81 = vector.broadcast %80 : f32 to vector<2x256xf32>
    %82 = arith.mulf %81, %79 : vector<2x256xf32>
    %83 = arith.addf %78, %82 : vector<2x256xf32>
    %84 = vector.extract_strided_slice %14 {offsets = [0, 173], sizes = [2, 256], strides = [1, 1]} : vector<2x512xf32> to vector<2x256xf32>
    %c91 = arith.constant 91 : index
    %85 = memref.load %arg2[%c91] : memref<98xf32, #tpu.memory_space<smem>>
    %86 = vector.broadcast %85 : f32 to vector<2x256xf32>
    %87 = arith.mulf %86, %84 : vector<2x256xf32>
    %88 = arith.addf %83, %87 : vector<2x256xf32>
    %c-3_i32 = arith.constant -3 : i32
    %89 = vector.broadcast %c-3_i32 : i32 to vector<1x256xi32>
    %90 = arith.addi %17, %89 : vector<1x256xi32>
    %c0_i32 = arith.constant 0 : i32
    %91 = vector.broadcast %c0_i32 : i32 to vector<1x256xi32>
    %92 = arith.cmpi sge, %90, %91 : vector<1x256xi32>
    %c-3_i32_7 = arith.constant -3 : i32
    %93 = vector.broadcast %c-3_i32_7 : i32 to vector<1x256xi32>
    %94 = arith.addi %17, %93 : vector<1x256xi32>
    %c16_i32 = arith.constant 16 : i32
    %95 = vector.broadcast %c16_i32 : i32 to vector<1x256xi32>
    %96 = arith.cmpi slt, %94, %95 : vector<1x256xi32>
    %97 = arith.andi %92, %96 : vector<1x256xi1>
    %cst_8 = arith.constant 0.000000e+00 : f32
    %98 = vector.shape_cast %97 : vector<1x256xi1> to vector<1x256xi1>
    %99 = vector.broadcast %98 : vector<1x256xi1> to vector<2x256xi1>
    %100 = vector.broadcast %cst_8 : f32 to vector<2x256xf32>
    %101 = arith.select %99, %88, %100 : vector<2x256xi1>, vector<2x256xf32>
    %102 = arith.addf %19, %101 : vector<2x256xf32>
    %103 = vector.extract_strided_slice %13 {offsets = [0, 78], sizes = [2, 256], strides = [1, 1]} : vector<2x512xf32> to vector<2x256xf32>
    %c1 = arith.constant 1 : index
    %104 = memref.load %arg2[%c1] : memref<98xf32, #tpu.memory_space<smem>>
    %105 = vector.broadcast %104 : f32 to vector<2x256xf32>
    %106 = arith.mulf %105, %103 : vector<2x256xf32>
    %107 = vector.extract_strided_slice %13 {offsets = [0, 94], sizes = [2, 256], strides = [1, 1]} : vector<2x512xf32> to vector<2x256xf32>
    %c8 = arith.constant 8 : index
    %108 = memref.load %arg2[%c8] : memref<98xf32, #tpu.memory_space<smem>>
    %109 = vector.broadcast %108 : f32 to vector<2x256xf32>
    %110 = arith.mulf %109, %107 : vector<2x256xf32>
    %111 = arith.addf %106, %110 : vector<2x256xf32>
    %112 = vector.extract_strided_slice %13 {offsets = [0, 110], sizes = [2, 256], strides = [1, 1]} : vector<2x512xf32> to vector<2x256xf32>
    %c15 = arith.constant 15 : index
    %113 = memref.load %arg2[%c15] : memref<98xf32, #tpu.memory_space<smem>>
    %114 = vector.broadcast %113 : f32 to vector<2x256xf32>
    %115 = arith.mulf %114, %112 : vector<2x256xf32>
    %116 = arith.addf %111, %115 : vector<2x256xf32>
    %117 = vector.extract_strided_slice %13 {offsets = [0, 126], sizes = [2, 256], strides = [1, 1]} : vector<2x512xf32> to vector<2x256xf32>
    %c22 = arith.constant 22 : index
    %118 = memref.load %arg2[%c22] : memref<98xf32, #tpu.memory_space<smem>>
    %119 = vector.broadcast %118 : f32 to vector<2x256xf32>
    %120 = arith.mulf %119, %117 : vector<2x256xf32>
    %121 = arith.addf %116, %120 : vector<2x256xf32>
    %122 = vector.extract_strided_slice %13 {offsets = [0, 142], sizes = [2, 256], strides = [1, 1]} : vector<2x512xf32> to vector<2x256xf32>
    %c29 = arith.constant 29 : index
    %123 = memref.load %arg2[%c29] : memref<98xf32, #tpu.memory_space<smem>>
    %124 = vector.broadcast %123 : f32 to vector<2x256xf32>
    %125 = arith.mulf %124, %122 : vector<2x256xf32>
    %126 = arith.addf %121, %125 : vector<2x256xf32>
    %127 = vector.extract_strided_slice %13 {offsets = [0, 158], sizes = [2, 256], strides = [1, 1]} : vector<2x512xf32> to vector<2x256xf32>
    %c36 = arith.constant 36 : index
    %128 = memref.load %arg2[%c36] : memref<98xf32, #tpu.memory_space<smem>>
    %129 = vector.broadcast %128 : f32 to vector<2x256xf32>
    %130 = arith.mulf %129, %127 : vector<2x256xf32>
    %131 = arith.addf %126, %130 : vector<2x256xf32>
    %132 = vector.extract_strided_slice %13 {offsets = [0, 174], sizes = [2, 256], strides = [1, 1]} : vector<2x512xf32> to vector<2x256xf32>
    %c43 = arith.constant 43 : index
    %133 = memref.load %arg2[%c43] : memref<98xf32, #tpu.memory_space<smem>>
    %134 = vector.broadcast %133 : f32 to vector<2x256xf32>
    %135 = arith.mulf %134, %132 : vector<2x256xf32>
    %136 = arith.addf %131, %135 : vector<2x256xf32>
    %137 = vector.extract_strided_slice %14 {offsets = [0, 78], sizes = [2, 256], strides = [1, 1]} : vector<2x512xf32> to vector<2x256xf32>
    %c50 = arith.constant 50 : index
    %138 = memref.load %arg2[%c50] : memref<98xf32, #tpu.memory_space<smem>>
    %139 = vector.broadcast %138 : f32 to vector<2x256xf32>
    %140 = arith.mulf %139, %137 : vector<2x256xf32>
    %141 = arith.addf %136, %140 : vector<2x256xf32>
    %142 = vector.extract_strided_slice %14 {offsets = [0, 94], sizes = [2, 256], strides = [1, 1]} : vector<2x512xf32> to vector<2x256xf32>
    %c57 = arith.constant 57 : index
    %143 = memref.load %arg2[%c57] : memref<98xf32, #tpu.memory_space<smem>>
    %144 = vector.broadcast %143 : f32 to vector<2x256xf32>
    %145 = arith.mulf %144, %142 : vector<2x256xf32>
    %146 = arith.addf %141, %145 : vector<2x256xf32>
    %147 = vector.extract_strided_slice %14 {offsets = [0, 110], sizes = [2, 256], strides = [1, 1]} : vector<2x512xf32> to vector<2x256xf32>
    %c64 = arith.constant 64 : index
    %148 = memref.load %arg2[%c64] : memref<98xf32, #tpu.memory_space<smem>>
    %149 = vector.broadcast %148 : f32 to vector<2x256xf32>
    %150 = arith.mulf %149, %147 : vector<2x256xf32>
    %151 = arith.addf %146, %150 : vector<2x256xf32>
    %152 = vector.extract_strided_slice %14 {offsets = [0, 126], sizes = [2, 256], strides = [1, 1]} : vector<2x512xf32> to vector<2x256xf32>
    %c71 = arith.constant 71 : index
    %153 = memref.load %arg2[%c71] : memref<98xf32, #tpu.memory_space<smem>>
    %154 = vector.broadcast %153 : f32 to vector<2x256xf32>
    %155 = arith.mulf %154, %152 : vector<2x256xf32>
    %156 = arith.addf %151, %155 : vector<2x256xf32>
    %157 = vector.extract_strided_slice %14 {offsets = [0, 142], sizes = [2, 256], strides = [1, 1]} : vector<2x512xf32> to vector<2x256xf32>
    %c78 = arith.constant 78 : index
    %158 = memref.load %arg2[%c78] : memref<98xf32, #tpu.memory_space<smem>>
    %159 = vector.broadcast %158 : f32 to vector<2x256xf32>
    %160 = arith.mulf %159, %157 : vector<2x256xf32>
    %161 = arith.addf %156, %160 : vector<2x256xf32>
    %162 = vector.extract_strided_slice %14 {offsets = [0, 158], sizes = [2, 256], strides = [1, 1]} : vector<2x512xf32> to vector<2x256xf32>
    %c85 = arith.constant 85 : index
    %163 = memref.load %arg2[%c85] : memref<98xf32, #tpu.memory_space<smem>>
    %164 = vector.broadcast %163 : f32 to vector<2x256xf32>
    %165 = arith.mulf %164, %162 : vector<2x256xf32>
    %166 = arith.addf %161, %165 : vector<2x256xf32>
    %167 = vector.extract_strided_slice %14 {offsets = [0, 174], sizes = [2, 256], strides = [1, 1]} : vector<2x512xf32> to vector<2x256xf32>
    %c92 = arith.constant 92 : index
    %168 = memref.load %arg2[%c92] : memref<98xf32, #tpu.memory_space<smem>>
    %169 = vector.broadcast %168 : f32 to vector<2x256xf32>
    %170 = arith.mulf %169, %167 : vector<2x256xf32>
    %171 = arith.addf %166, %170 : vector<2x256xf32>
    %c-2_i32 = arith.constant -2 : i32
    %172 = vector.broadcast %c-2_i32 : i32 to vector<1x256xi32>
    %173 = arith.addi %17, %172 : vector<1x256xi32>
    %c0_i32_9 = arith.constant 0 : i32
    %174 = vector.broadcast %c0_i32_9 : i32 to vector<1x256xi32>
    %175 = arith.cmpi sge, %173, %174 : vector<1x256xi32>
    %c-2_i32_10 = arith.constant -2 : i32
    %176 = vector.broadcast %c-2_i32_10 : i32 to vector<1x256xi32>
    %177 = arith.addi %17, %176 : vector<1x256xi32>
    %c16_i32_11 = arith.constant 16 : i32
    %178 = vector.broadcast %c16_i32_11 : i32 to vector<1x256xi32>
    %179 = arith.cmpi slt, %177, %178 : vector<1x256xi32>
    %180 = arith.andi %175, %179 : vector<1x256xi1>
    %cst_12 = arith.constant 0.000000e+00 : f32
    %181 = vector.shape_cast %180 : vector<1x256xi1> to vector<1x256xi1>
    %182 = vector.broadcast %181 : vector<1x256xi1> to vector<2x256xi1>
    %183 = vector.broadcast %cst_12 : f32 to vector<2x256xf32>
    %184 = arith.select %182, %171, %183 : vector<2x256xi1>, vector<2x256xf32>
    %185 = arith.addf %102, %184 : vector<2x256xf32>
    %186 = vector.extract_strided_slice %13 {offsets = [0, 79], sizes = [2, 256], strides = [1, 1]} : vector<2x512xf32> to vector<2x256xf32>
    %c2 = arith.constant 2 : index
    %187 = memref.load %arg2[%c2] : memref<98xf32, #tpu.memory_space<smem>>
    %188 = vector.broadcast %187 : f32 to vector<2x256xf32>
    %189 = arith.mulf %188, %186 : vector<2x256xf32>
    %190 = vector.extract_strided_slice %13 {offsets = [0, 95], sizes = [2, 256], strides = [1, 1]} : vector<2x512xf32> to vector<2x256xf32>
    %c9 = arith.constant 9 : index
    %191 = memref.load %arg2[%c9] : memref<98xf32, #tpu.memory_space<smem>>
    %192 = vector.broadcast %191 : f32 to vector<2x256xf32>
    %193 = arith.mulf %192, %190 : vector<2x256xf32>
    %194 = arith.addf %189, %193 : vector<2x256xf32>
    %195 = vector.extract_strided_slice %13 {offsets = [0, 111], sizes = [2, 256], strides = [1, 1]} : vector<2x512xf32> to vector<2x256xf32>
    %c16 = arith.constant 16 : index
    %196 = memref.load %arg2[%c16] : memref<98xf32, #tpu.memory_space<smem>>
    %197 = vector.broadcast %196 : f32 to vector<2x256xf32>
    %198 = arith.mulf %197, %195 : vector<2x256xf32>
    %199 = arith.addf %194, %198 : vector<2x256xf32>
    %200 = vector.extract_strided_slice %13 {offsets = [0, 127], sizes = [2, 256], strides = [1, 1]} : vector<2x512xf32> to vector<2x256xf32>
    %c23 = arith.constant 23 : index
    %201 = memref.load %arg2[%c23] : memref<98xf32, #tpu.memory_space<smem>>
    %202 = vector.broadcast %201 : f32 to vector<2x256xf32>
    %203 = arith.mulf %202, %200 : vector<2x256xf32>
    %204 = arith.addf %199, %203 : vector<2x256xf32>
    %205 = vector.extract_strided_slice %13 {offsets = [0, 143], sizes = [2, 256], strides = [1, 1]} : vector<2x512xf32> to vector<2x256xf32>
    %c30 = arith.constant 30 : index
    %206 = memref.load %arg2[%c30] : memref<98xf32, #tpu.memory_space<smem>>
    %207 = vector.broadcast %206 : f32 to vector<2x256xf32>
    %208 = arith.mulf %207, %205 : vector<2x256xf32>
    %209 = arith.addf %204, %208 : vector<2x256xf32>
    %210 = vector.extract_strided_slice %13 {offsets = [0, 159], sizes = [2, 256], strides = [1, 1]} : vector<2x512xf32> to vector<2x256xf32>
    %c37 = arith.constant 37 : index
    %211 = memref.load %arg2[%c37] : memref<98xf32, #tpu.memory_space<smem>>
    %212 = vector.broadcast %211 : f32 to vector<2x256xf32>
    %213 = arith.mulf %212, %210 : vector<2x256xf32>
    %214 = arith.addf %209, %213 : vector<2x256xf32>
    %215 = vector.extract_strided_slice %13 {offsets = [0, 175], sizes = [2, 256], strides = [1, 1]} : vector<2x512xf32> to vector<2x256xf32>
    %c44 = arith.constant 44 : index
    %216 = memref.load %arg2[%c44] : memref<98xf32, #tpu.memory_space<smem>>
    %217 = vector.broadcast %216 : f32 to vector<2x256xf32>
    %218 = arith.mulf %217, %215 : vector<2x256xf32>
    %219 = arith.addf %214, %218 : vector<2x256xf32>
    %220 = vector.extract_strided_slice %14 {offsets = [0, 79], sizes = [2, 256], strides = [1, 1]} : vector<2x512xf32> to vector<2x256xf32>
    %c51 = arith.constant 51 : index
    %221 = memref.load %arg2[%c51] : memref<98xf32, #tpu.memory_space<smem>>
    %222 = vector.broadcast %221 : f32 to vector<2x256xf32>
    %223 = arith.mulf %222, %220 : vector<2x256xf32>
    %224 = arith.addf %219, %223 : vector<2x256xf32>
    %225 = vector.extract_strided_slice %14 {offsets = [0, 95], sizes = [2, 256], strides = [1, 1]} : vector<2x512xf32> to vector<2x256xf32>
    %c58 = arith.constant 58 : index
    %226 = memref.load %arg2[%c58] : memref<98xf32, #tpu.memory_space<smem>>
    %227 = vector.broadcast %226 : f32 to vector<2x256xf32>
    %228 = arith.mulf %227, %225 : vector<2x256xf32>
    %229 = arith.addf %224, %228 : vector<2x256xf32>
    %230 = vector.extract_strided_slice %14 {offsets = [0, 111], sizes = [2, 256], strides = [1, 1]} : vector<2x512xf32> to vector<2x256xf32>
    %c65 = arith.constant 65 : index
    %231 = memref.load %arg2[%c65] : memref<98xf32, #tpu.memory_space<smem>>
    %232 = vector.broadcast %231 : f32 to vector<2x256xf32>
    %233 = arith.mulf %232, %230 : vector<2x256xf32>
    %234 = arith.addf %229, %233 : vector<2x256xf32>
    %235 = vector.extract_strided_slice %14 {offsets = [0, 127], sizes = [2, 256], strides = [1, 1]} : vector<2x512xf32> to vector<2x256xf32>
    %c72 = arith.constant 72 : index
    %236 = memref.load %arg2[%c72] : memref<98xf32, #tpu.memory_space<smem>>
    %237 = vector.broadcast %236 : f32 to vector<2x256xf32>
    %238 = arith.mulf %237, %235 : vector<2x256xf32>
    %239 = arith.addf %234, %238 : vector<2x256xf32>
    %240 = vector.extract_strided_slice %14 {offsets = [0, 143], sizes = [2, 256], strides = [1, 1]} : vector<2x512xf32> to vector<2x256xf32>
    %c79 = arith.constant 79 : index
    %241 = memref.load %arg2[%c79] : memref<98xf32, #tpu.memory_space<smem>>
    %242 = vector.broadcast %241 : f32 to vector<2x256xf32>
    %243 = arith.mulf %242, %240 : vector<2x256xf32>
    %244 = arith.addf %239, %243 : vector<2x256xf32>
    %245 = vector.extract_strided_slice %14 {offsets = [0, 159], sizes = [2, 256], strides = [1, 1]} : vector<2x512xf32> to vector<2x256xf32>
    %c86 = arith.constant 86 : index
    %246 = memref.load %arg2[%c86] : memref<98xf32, #tpu.memory_space<smem>>
    %247 = vector.broadcast %246 : f32 to vector<2x256xf32>
    %248 = arith.mulf %247, %245 : vector<2x256xf32>
    %249 = arith.addf %244, %248 : vector<2x256xf32>
    %250 = vector.extract_strided_slice %14 {offsets = [0, 175], sizes = [2, 256], strides = [1, 1]} : vector<2x512xf32> to vector<2x256xf32>
    %c93 = arith.constant 93 : index
    %251 = memref.load %arg2[%c93] : memref<98xf32, #tpu.memory_space<smem>>
    %252 = vector.broadcast %251 : f32 to vector<2x256xf32>
    %253 = arith.mulf %252, %250 : vector<2x256xf32>
    %254 = arith.addf %249, %253 : vector<2x256xf32>
    %c-1_i32 = arith.constant -1 : i32
    %255 = vector.broadcast %c-1_i32 : i32 to vector<1x256xi32>
    %256 = arith.addi %17, %255 : vector<1x256xi32>
    %c0_i32_13 = arith.constant 0 : i32
    %257 = vector.broadcast %c0_i32_13 : i32 to vector<1x256xi32>
    %258 = arith.cmpi sge, %256, %257 : vector<1x256xi32>
    %c-1_i32_14 = arith.constant -1 : i32
    %259 = vector.broadcast %c-1_i32_14 : i32 to vector<1x256xi32>
    %260 = arith.addi %17, %259 : vector<1x256xi32>
    %c16_i32_15 = arith.constant 16 : i32
    %261 = vector.broadcast %c16_i32_15 : i32 to vector<1x256xi32>
    %262 = arith.cmpi slt, %260, %261 : vector<1x256xi32>
    %263 = arith.andi %258, %262 : vector<1x256xi1>
    %cst_16 = arith.constant 0.000000e+00 : f32
    %264 = vector.shape_cast %263 : vector<1x256xi1> to vector<1x256xi1>
    %265 = vector.broadcast %264 : vector<1x256xi1> to vector<2x256xi1>
    %266 = vector.broadcast %cst_16 : f32 to vector<2x256xf32>
    %267 = arith.select %265, %254, %266 : vector<2x256xi1>, vector<2x256xf32>
    %268 = arith.addf %185, %267 : vector<2x256xf32>
    %269 = vector.extract_strided_slice %13 {offsets = [0, 80], sizes = [2, 256], strides = [1, 1]} : vector<2x512xf32> to vector<2x256xf32>
    %c3 = arith.constant 3 : index
    %270 = memref.load %arg2[%c3] : memref<98xf32, #tpu.memory_space<smem>>
    %271 = vector.broadcast %270 : f32 to vector<2x256xf32>
    %272 = arith.mulf %271, %269 : vector<2x256xf32>
    %273 = vector.extract_strided_slice %13 {offsets = [0, 96], sizes = [2, 256], strides = [1, 1]} : vector<2x512xf32> to vector<2x256xf32>
    %c10 = arith.constant 10 : index
    %274 = memref.load %arg2[%c10] : memref<98xf32, #tpu.memory_space<smem>>
    %275 = vector.broadcast %274 : f32 to vector<2x256xf32>
    %276 = arith.mulf %275, %273 : vector<2x256xf32>
    %277 = arith.addf %272, %276 : vector<2x256xf32>
    %278 = vector.extract_strided_slice %13 {offsets = [0, 112], sizes = [2, 256], strides = [1, 1]} : vector<2x512xf32> to vector<2x256xf32>
    %c17 = arith.constant 17 : index
    %279 = memref.load %arg2[%c17] : memref<98xf32, #tpu.memory_space<smem>>
    %280 = vector.broadcast %279 : f32 to vector<2x256xf32>
    %281 = arith.mulf %280, %278 : vector<2x256xf32>
    %282 = arith.addf %277, %281 : vector<2x256xf32>
    %283 = vector.extract_strided_slice %13 {offsets = [0, 128], sizes = [2, 256], strides = [1, 1]} : vector<2x512xf32> to vector<2x256xf32>
    %c24 = arith.constant 24 : index
    %284 = memref.load %arg2[%c24] : memref<98xf32, #tpu.memory_space<smem>>
    %285 = vector.broadcast %284 : f32 to vector<2x256xf32>
    %286 = arith.mulf %285, %283 : vector<2x256xf32>
    %287 = arith.addf %282, %286 : vector<2x256xf32>
    %288 = vector.extract_strided_slice %13 {offsets = [0, 144], sizes = [2, 256], strides = [1, 1]} : vector<2x512xf32> to vector<2x256xf32>
    %c31 = arith.constant 31 : index
    %289 = memref.load %arg2[%c31] : memref<98xf32, #tpu.memory_space<smem>>
    %290 = vector.broadcast %289 : f32 to vector<2x256xf32>
    %291 = arith.mulf %290, %288 : vector<2x256xf32>
    %292 = arith.addf %287, %291 : vector<2x256xf32>
    %293 = vector.extract_strided_slice %13 {offsets = [0, 160], sizes = [2, 256], strides = [1, 1]} : vector<2x512xf32> to vector<2x256xf32>
    %c38 = arith.constant 38 : index
    %294 = memref.load %arg2[%c38] : memref<98xf32, #tpu.memory_space<smem>>
    %295 = vector.broadcast %294 : f32 to vector<2x256xf32>
    %296 = arith.mulf %295, %293 : vector<2x256xf32>
    %297 = arith.addf %292, %296 : vector<2x256xf32>
    %298 = vector.extract_strided_slice %13 {offsets = [0, 176], sizes = [2, 256], strides = [1, 1]} : vector<2x512xf32> to vector<2x256xf32>
    %c45 = arith.constant 45 : index
    %299 = memref.load %arg2[%c45] : memref<98xf32, #tpu.memory_space<smem>>
    %300 = vector.broadcast %299 : f32 to vector<2x256xf32>
    %301 = arith.mulf %300, %298 : vector<2x256xf32>
    %302 = arith.addf %297, %301 : vector<2x256xf32>
    %303 = vector.extract_strided_slice %14 {offsets = [0, 80], sizes = [2, 256], strides = [1, 1]} : vector<2x512xf32> to vector<2x256xf32>
    %c52 = arith.constant 52 : index
    %304 = memref.load %arg2[%c52] : memref<98xf32, #tpu.memory_space<smem>>
    %305 = vector.broadcast %304 : f32 to vector<2x256xf32>
    %306 = arith.mulf %305, %303 : vector<2x256xf32>
    %307 = arith.addf %302, %306 : vector<2x256xf32>
    %308 = vector.extract_strided_slice %14 {offsets = [0, 96], sizes = [2, 256], strides = [1, 1]} : vector<2x512xf32> to vector<2x256xf32>
    %c59 = arith.constant 59 : index
    %309 = memref.load %arg2[%c59] : memref<98xf32, #tpu.memory_space<smem>>
    %310 = vector.broadcast %309 : f32 to vector<2x256xf32>
    %311 = arith.mulf %310, %308 : vector<2x256xf32>
    %312 = arith.addf %307, %311 : vector<2x256xf32>
    %313 = vector.extract_strided_slice %14 {offsets = [0, 112], sizes = [2, 256], strides = [1, 1]} : vector<2x512xf32> to vector<2x256xf32>
    %c66 = arith.constant 66 : index
    %314 = memref.load %arg2[%c66] : memref<98xf32, #tpu.memory_space<smem>>
    %315 = vector.broadcast %314 : f32 to vector<2x256xf32>
    %316 = arith.mulf %315, %313 : vector<2x256xf32>
    %317 = arith.addf %312, %316 : vector<2x256xf32>
    %318 = vector.extract_strided_slice %14 {offsets = [0, 128], sizes = [2, 256], strides = [1, 1]} : vector<2x512xf32> to vector<2x256xf32>
    %c73 = arith.constant 73 : index
    %319 = memref.load %arg2[%c73] : memref<98xf32, #tpu.memory_space<smem>>
    %320 = vector.broadcast %319 : f32 to vector<2x256xf32>
    %321 = arith.mulf %320, %318 : vector<2x256xf32>
    %322 = arith.addf %317, %321 : vector<2x256xf32>
    %323 = vector.extract_strided_slice %14 {offsets = [0, 144], sizes = [2, 256], strides = [1, 1]} : vector<2x512xf32> to vector<2x256xf32>
    %c80 = arith.constant 80 : index
    %324 = memref.load %arg2[%c80] : memref<98xf32, #tpu.memory_space<smem>>
    %325 = vector.broadcast %324 : f32 to vector<2x256xf32>
    %326 = arith.mulf %325, %323 : vector<2x256xf32>
    %327 = arith.addf %322, %326 : vector<2x256xf32>
    %328 = vector.extract_strided_slice %14 {offsets = [0, 160], sizes = [2, 256], strides = [1, 1]} : vector<2x512xf32> to vector<2x256xf32>
    %c87 = arith.constant 87 : index
    %329 = memref.load %arg2[%c87] : memref<98xf32, #tpu.memory_space<smem>>
    %330 = vector.broadcast %329 : f32 to vector<2x256xf32>
    %331 = arith.mulf %330, %328 : vector<2x256xf32>
    %332 = arith.addf %327, %331 : vector<2x256xf32>
    %333 = vector.extract_strided_slice %14 {offsets = [0, 176], sizes = [2, 256], strides = [1, 1]} : vector<2x512xf32> to vector<2x256xf32>
    %c94 = arith.constant 94 : index
    %334 = memref.load %arg2[%c94] : memref<98xf32, #tpu.memory_space<smem>>
    %335 = vector.broadcast %334 : f32 to vector<2x256xf32>
    %336 = arith.mulf %335, %333 : vector<2x256xf32>
    %337 = arith.addf %332, %336 : vector<2x256xf32>
    %338 = arith.addf %268, %337 : vector<2x256xf32>
    %339 = vector.extract_strided_slice %13 {offsets = [0, 81], sizes = [2, 256], strides = [1, 1]} : vector<2x512xf32> to vector<2x256xf32>
    %c4 = arith.constant 4 : index
    %340 = memref.load %arg2[%c4] : memref<98xf32, #tpu.memory_space<smem>>
    %341 = vector.broadcast %340 : f32 to vector<2x256xf32>
    %342 = arith.mulf %341, %339 : vector<2x256xf32>
    %343 = vector.extract_strided_slice %13 {offsets = [0, 97], sizes = [2, 256], strides = [1, 1]} : vector<2x512xf32> to vector<2x256xf32>
    %c11 = arith.constant 11 : index
    %344 = memref.load %arg2[%c11] : memref<98xf32, #tpu.memory_space<smem>>
    %345 = vector.broadcast %344 : f32 to vector<2x256xf32>
    %346 = arith.mulf %345, %343 : vector<2x256xf32>
    %347 = arith.addf %342, %346 : vector<2x256xf32>
    %348 = vector.extract_strided_slice %13 {offsets = [0, 113], sizes = [2, 256], strides = [1, 1]} : vector<2x512xf32> to vector<2x256xf32>
    %c18 = arith.constant 18 : index
    %349 = memref.load %arg2[%c18] : memref<98xf32, #tpu.memory_space<smem>>
    %350 = vector.broadcast %349 : f32 to vector<2x256xf32>
    %351 = arith.mulf %350, %348 : vector<2x256xf32>
    %352 = arith.addf %347, %351 : vector<2x256xf32>
    %353 = vector.extract_strided_slice %13 {offsets = [0, 129], sizes = [2, 256], strides = [1, 1]} : vector<2x512xf32> to vector<2x256xf32>
    %c25 = arith.constant 25 : index
    %354 = memref.load %arg2[%c25] : memref<98xf32, #tpu.memory_space<smem>>
    %355 = vector.broadcast %354 : f32 to vector<2x256xf32>
    %356 = arith.mulf %355, %353 : vector<2x256xf32>
    %357 = arith.addf %352, %356 : vector<2x256xf32>
    %358 = vector.extract_strided_slice %13 {offsets = [0, 145], sizes = [2, 256], strides = [1, 1]} : vector<2x512xf32> to vector<2x256xf32>
    %c32 = arith.constant 32 : index
    %359 = memref.load %arg2[%c32] : memref<98xf32, #tpu.memory_space<smem>>
    %360 = vector.broadcast %359 : f32 to vector<2x256xf32>
    %361 = arith.mulf %360, %358 : vector<2x256xf32>
    %362 = arith.addf %357, %361 : vector<2x256xf32>
    %363 = vector.extract_strided_slice %13 {offsets = [0, 161], sizes = [2, 256], strides = [1, 1]} : vector<2x512xf32> to vector<2x256xf32>
    %c39 = arith.constant 39 : index
    %364 = memref.load %arg2[%c39] : memref<98xf32, #tpu.memory_space<smem>>
    %365 = vector.broadcast %364 : f32 to vector<2x256xf32>
    %366 = arith.mulf %365, %363 : vector<2x256xf32>
    %367 = arith.addf %362, %366 : vector<2x256xf32>
    %368 = vector.extract_strided_slice %13 {offsets = [0, 177], sizes = [2, 256], strides = [1, 1]} : vector<2x512xf32> to vector<2x256xf32>
    %c46 = arith.constant 46 : index
    %369 = memref.load %arg2[%c46] : memref<98xf32, #tpu.memory_space<smem>>
    %370 = vector.broadcast %369 : f32 to vector<2x256xf32>
    %371 = arith.mulf %370, %368 : vector<2x256xf32>
    %372 = arith.addf %367, %371 : vector<2x256xf32>
    %373 = vector.extract_strided_slice %14 {offsets = [0, 81], sizes = [2, 256], strides = [1, 1]} : vector<2x512xf32> to vector<2x256xf32>
    %c53 = arith.constant 53 : index
    %374 = memref.load %arg2[%c53] : memref<98xf32, #tpu.memory_space<smem>>
    %375 = vector.broadcast %374 : f32 to vector<2x256xf32>
    %376 = arith.mulf %375, %373 : vector<2x256xf32>
    %377 = arith.addf %372, %376 : vector<2x256xf32>
    %378 = vector.extract_strided_slice %14 {offsets = [0, 97], sizes = [2, 256], strides = [1, 1]} : vector<2x512xf32> to vector<2x256xf32>
    %c60 = arith.constant 60 : index
    %379 = memref.load %arg2[%c60] : memref<98xf32, #tpu.memory_space<smem>>
    %380 = vector.broadcast %379 : f32 to vector<2x256xf32>
    %381 = arith.mulf %380, %378 : vector<2x256xf32>
    %382 = arith.addf %377, %381 : vector<2x256xf32>
    %383 = vector.extract_strided_slice %14 {offsets = [0, 113], sizes = [2, 256], strides = [1, 1]} : vector<2x512xf32> to vector<2x256xf32>
    %c67 = arith.constant 67 : index
    %384 = memref.load %arg2[%c67] : memref<98xf32, #tpu.memory_space<smem>>
    %385 = vector.broadcast %384 : f32 to vector<2x256xf32>
    %386 = arith.mulf %385, %383 : vector<2x256xf32>
    %387 = arith.addf %382, %386 : vector<2x256xf32>
    %388 = vector.extract_strided_slice %14 {offsets = [0, 129], sizes = [2, 256], strides = [1, 1]} : vector<2x512xf32> to vector<2x256xf32>
    %c74 = arith.constant 74 : index
    %389 = memref.load %arg2[%c74] : memref<98xf32, #tpu.memory_space<smem>>
    %390 = vector.broadcast %389 : f32 to vector<2x256xf32>
    %391 = arith.mulf %390, %388 : vector<2x256xf32>
    %392 = arith.addf %387, %391 : vector<2x256xf32>
    %393 = vector.extract_strided_slice %14 {offsets = [0, 145], sizes = [2, 256], strides = [1, 1]} : vector<2x512xf32> to vector<2x256xf32>
    %c81 = arith.constant 81 : index
    %394 = memref.load %arg2[%c81] : memref<98xf32, #tpu.memory_space<smem>>
    %395 = vector.broadcast %394 : f32 to vector<2x256xf32>
    %396 = arith.mulf %395, %393 : vector<2x256xf32>
    %397 = arith.addf %392, %396 : vector<2x256xf32>
    %398 = vector.extract_strided_slice %14 {offsets = [0, 161], sizes = [2, 256], strides = [1, 1]} : vector<2x512xf32> to vector<2x256xf32>
    %c88 = arith.constant 88 : index
    %399 = memref.load %arg2[%c88] : memref<98xf32, #tpu.memory_space<smem>>
    %400 = vector.broadcast %399 : f32 to vector<2x256xf32>
    %401 = arith.mulf %400, %398 : vector<2x256xf32>
    %402 = arith.addf %397, %401 : vector<2x256xf32>
    %403 = vector.extract_strided_slice %14 {offsets = [0, 177], sizes = [2, 256], strides = [1, 1]} : vector<2x512xf32> to vector<2x256xf32>
    %c95 = arith.constant 95 : index
    %404 = memref.load %arg2[%c95] : memref<98xf32, #tpu.memory_space<smem>>
    %405 = vector.broadcast %404 : f32 to vector<2x256xf32>
    %406 = arith.mulf %405, %403 : vector<2x256xf32>
    %407 = arith.addf %402, %406 : vector<2x256xf32>
    %c1_i32 = arith.constant 1 : i32
    %408 = vector.broadcast %c1_i32 : i32 to vector<1x256xi32>
    %409 = arith.addi %17, %408 : vector<1x256xi32>
    %c0_i32_17 = arith.constant 0 : i32
    %410 = vector.broadcast %c0_i32_17 : i32 to vector<1x256xi32>
    %411 = arith.cmpi sge, %409, %410 : vector<1x256xi32>
    %c1_i32_18 = arith.constant 1 : i32
    %412 = vector.broadcast %c1_i32_18 : i32 to vector<1x256xi32>
    %413 = arith.addi %17, %412 : vector<1x256xi32>
    %c16_i32_19 = arith.constant 16 : i32
    %414 = vector.broadcast %c16_i32_19 : i32 to vector<1x256xi32>
    %415 = arith.cmpi slt, %413, %414 : vector<1x256xi32>
    %416 = arith.andi %411, %415 : vector<1x256xi1>
    %cst_20 = arith.constant 0.000000e+00 : f32
    %417 = vector.shape_cast %416 : vector<1x256xi1> to vector<1x256xi1>
    %418 = vector.broadcast %417 : vector<1x256xi1> to vector<2x256xi1>
    %419 = vector.broadcast %cst_20 : f32 to vector<2x256xf32>
    %420 = arith.select %418, %407, %419 : vector<2x256xi1>, vector<2x256xf32>
    %421 = arith.addf %338, %420 : vector<2x256xf32>
    %422 = vector.extract_strided_slice %13 {offsets = [0, 82], sizes = [2, 256], strides = [1, 1]} : vector<2x512xf32> to vector<2x256xf32>
    %c5 = arith.constant 5 : index
    %423 = memref.load %arg2[%c5] : memref<98xf32, #tpu.memory_space<smem>>
    %424 = vector.broadcast %423 : f32 to vector<2x256xf32>
    %425 = arith.mulf %424, %422 : vector<2x256xf32>
    %426 = vector.extract_strided_slice %13 {offsets = [0, 98], sizes = [2, 256], strides = [1, 1]} : vector<2x512xf32> to vector<2x256xf32>
    %c12 = arith.constant 12 : index
    %427 = memref.load %arg2[%c12] : memref<98xf32, #tpu.memory_space<smem>>
    %428 = vector.broadcast %427 : f32 to vector<2x256xf32>
    %429 = arith.mulf %428, %426 : vector<2x256xf32>
    %430 = arith.addf %425, %429 : vector<2x256xf32>
    %431 = vector.extract_strided_slice %13 {offsets = [0, 114], sizes = [2, 256], strides = [1, 1]} : vector<2x512xf32> to vector<2x256xf32>
    %c19 = arith.constant 19 : index
    %432 = memref.load %arg2[%c19] : memref<98xf32, #tpu.memory_space<smem>>
    %433 = vector.broadcast %432 : f32 to vector<2x256xf32>
    %434 = arith.mulf %433, %431 : vector<2x256xf32>
    %435 = arith.addf %430, %434 : vector<2x256xf32>
    %436 = vector.extract_strided_slice %13 {offsets = [0, 130], sizes = [2, 256], strides = [1, 1]} : vector<2x512xf32> to vector<2x256xf32>
    %c26 = arith.constant 26 : index
    %437 = memref.load %arg2[%c26] : memref<98xf32, #tpu.memory_space<smem>>
    %438 = vector.broadcast %437 : f32 to vector<2x256xf32>
    %439 = arith.mulf %438, %436 : vector<2x256xf32>
    %440 = arith.addf %435, %439 : vector<2x256xf32>
    %441 = vector.extract_strided_slice %13 {offsets = [0, 146], sizes = [2, 256], strides = [1, 1]} : vector<2x512xf32> to vector<2x256xf32>
    %c33 = arith.constant 33 : index
    %442 = memref.load %arg2[%c33] : memref<98xf32, #tpu.memory_space<smem>>
    %443 = vector.broadcast %442 : f32 to vector<2x256xf32>
    %444 = arith.mulf %443, %441 : vector<2x256xf32>
    %445 = arith.addf %440, %444 : vector<2x256xf32>
    %446 = vector.extract_strided_slice %13 {offsets = [0, 162], sizes = [2, 256], strides = [1, 1]} : vector<2x512xf32> to vector<2x256xf32>
    %c40 = arith.constant 40 : index
    %447 = memref.load %arg2[%c40] : memref<98xf32, #tpu.memory_space<smem>>
    %448 = vector.broadcast %447 : f32 to vector<2x256xf32>
    %449 = arith.mulf %448, %446 : vector<2x256xf32>
    %450 = arith.addf %445, %449 : vector<2x256xf32>
    %451 = vector.extract_strided_slice %13 {offsets = [0, 178], sizes = [2, 256], strides = [1, 1]} : vector<2x512xf32> to vector<2x256xf32>
    %c47 = arith.constant 47 : index
    %452 = memref.load %arg2[%c47] : memref<98xf32, #tpu.memory_space<smem>>
    %453 = vector.broadcast %452 : f32 to vector<2x256xf32>
    %454 = arith.mulf %453, %451 : vector<2x256xf32>
    %455 = arith.addf %450, %454 : vector<2x256xf32>
    %456 = vector.extract_strided_slice %14 {offsets = [0, 82], sizes = [2, 256], strides = [1, 1]} : vector<2x512xf32> to vector<2x256xf32>
    %c54 = arith.constant 54 : index
    %457 = memref.load %arg2[%c54] : memref<98xf32, #tpu.memory_space<smem>>
    %458 = vector.broadcast %457 : f32 to vector<2x256xf32>
    %459 = arith.mulf %458, %456 : vector<2x256xf32>
    %460 = arith.addf %455, %459 : vector<2x256xf32>
    %461 = vector.extract_strided_slice %14 {offsets = [0, 98], sizes = [2, 256], strides = [1, 1]} : vector<2x512xf32> to vector<2x256xf32>
    %c61 = arith.constant 61 : index
    %462 = memref.load %arg2[%c61] : memref<98xf32, #tpu.memory_space<smem>>
    %463 = vector.broadcast %462 : f32 to vector<2x256xf32>
    %464 = arith.mulf %463, %461 : vector<2x256xf32>
    %465 = arith.addf %460, %464 : vector<2x256xf32>
    %466 = vector.extract_strided_slice %14 {offsets = [0, 114], sizes = [2, 256], strides = [1, 1]} : vector<2x512xf32> to vector<2x256xf32>
    %c68 = arith.constant 68 : index
    %467 = memref.load %arg2[%c68] : memref<98xf32, #tpu.memory_space<smem>>
    %468 = vector.broadcast %467 : f32 to vector<2x256xf32>
    %469 = arith.mulf %468, %466 : vector<2x256xf32>
    %470 = arith.addf %465, %469 : vector<2x256xf32>
    %471 = vector.extract_strided_slice %14 {offsets = [0, 130], sizes = [2, 256], strides = [1, 1]} : vector<2x512xf32> to vector<2x256xf32>
    %c75 = arith.constant 75 : index
    %472 = memref.load %arg2[%c75] : memref<98xf32, #tpu.memory_space<smem>>
    %473 = vector.broadcast %472 : f32 to vector<2x256xf32>
    %474 = arith.mulf %473, %471 : vector<2x256xf32>
    %475 = arith.addf %470, %474 : vector<2x256xf32>
    %476 = vector.extract_strided_slice %14 {offsets = [0, 146], sizes = [2, 256], strides = [1, 1]} : vector<2x512xf32> to vector<2x256xf32>
    %c82 = arith.constant 82 : index
    %477 = memref.load %arg2[%c82] : memref<98xf32, #tpu.memory_space<smem>>
    %478 = vector.broadcast %477 : f32 to vector<2x256xf32>
    %479 = arith.mulf %478, %476 : vector<2x256xf32>
    %480 = arith.addf %475, %479 : vector<2x256xf32>
    %481 = vector.extract_strided_slice %14 {offsets = [0, 162], sizes = [2, 256], strides = [1, 1]} : vector<2x512xf32> to vector<2x256xf32>
    %c89 = arith.constant 89 : index
    %482 = memref.load %arg2[%c89] : memref<98xf32, #tpu.memory_space<smem>>
    %483 = vector.broadcast %482 : f32 to vector<2x256xf32>
    %484 = arith.mulf %483, %481 : vector<2x256xf32>
    %485 = arith.addf %480, %484 : vector<2x256xf32>
    %486 = vector.extract_strided_slice %14 {offsets = [0, 178], sizes = [2, 256], strides = [1, 1]} : vector<2x512xf32> to vector<2x256xf32>
    %c96 = arith.constant 96 : index
    %487 = memref.load %arg2[%c96] : memref<98xf32, #tpu.memory_space<smem>>
    %488 = vector.broadcast %487 : f32 to vector<2x256xf32>
    %489 = arith.mulf %488, %486 : vector<2x256xf32>
    %490 = arith.addf %485, %489 : vector<2x256xf32>
    %c2_i32 = arith.constant 2 : i32
    %491 = vector.broadcast %c2_i32 : i32 to vector<1x256xi32>
    %492 = arith.addi %17, %491 : vector<1x256xi32>
    %c0_i32_21 = arith.constant 0 : i32
    %493 = vector.broadcast %c0_i32_21 : i32 to vector<1x256xi32>
    %494 = arith.cmpi sge, %492, %493 : vector<1x256xi32>
    %c2_i32_22 = arith.constant 2 : i32
    %495 = vector.broadcast %c2_i32_22 : i32 to vector<1x256xi32>
    %496 = arith.addi %17, %495 : vector<1x256xi32>
    %c16_i32_23 = arith.constant 16 : i32
    %497 = vector.broadcast %c16_i32_23 : i32 to vector<1x256xi32>
    %498 = arith.cmpi slt, %496, %497 : vector<1x256xi32>
    %499 = arith.andi %494, %498 : vector<1x256xi1>
    %cst_24 = arith.constant 0.000000e+00 : f32
    %500 = vector.shape_cast %499 : vector<1x256xi1> to vector<1x256xi1>
    %501 = vector.broadcast %500 : vector<1x256xi1> to vector<2x256xi1>
    %502 = vector.broadcast %cst_24 : f32 to vector<2x256xf32>
    %503 = arith.select %501, %490, %502 : vector<2x256xi1>, vector<2x256xf32>
    %504 = arith.addf %421, %503 : vector<2x256xf32>
    %505 = vector.extract_strided_slice %13 {offsets = [0, 83], sizes = [2, 256], strides = [1, 1]} : vector<2x512xf32> to vector<2x256xf32>
    %c6 = arith.constant 6 : index
    %506 = memref.load %arg2[%c6] : memref<98xf32, #tpu.memory_space<smem>>
    %507 = vector.broadcast %506 : f32 to vector<2x256xf32>
    %508 = arith.mulf %507, %505 : vector<2x256xf32>
    %509 = vector.extract_strided_slice %13 {offsets = [0, 99], sizes = [2, 256], strides = [1, 1]} : vector<2x512xf32> to vector<2x256xf32>
    %c13 = arith.constant 13 : index
    %510 = memref.load %arg2[%c13] : memref<98xf32, #tpu.memory_space<smem>>
    %511 = vector.broadcast %510 : f32 to vector<2x256xf32>
    %512 = arith.mulf %511, %509 : vector<2x256xf32>
    %513 = arith.addf %508, %512 : vector<2x256xf32>
    %514 = vector.extract_strided_slice %13 {offsets = [0, 115], sizes = [2, 256], strides = [1, 1]} : vector<2x512xf32> to vector<2x256xf32>
    %c20 = arith.constant 20 : index
    %515 = memref.load %arg2[%c20] : memref<98xf32, #tpu.memory_space<smem>>
    %516 = vector.broadcast %515 : f32 to vector<2x256xf32>
    %517 = arith.mulf %516, %514 : vector<2x256xf32>
    %518 = arith.addf %513, %517 : vector<2x256xf32>
    %519 = vector.extract_strided_slice %13 {offsets = [0, 131], sizes = [2, 256], strides = [1, 1]} : vector<2x512xf32> to vector<2x256xf32>
    %c27 = arith.constant 27 : index
    %520 = memref.load %arg2[%c27] : memref<98xf32, #tpu.memory_space<smem>>
    %521 = vector.broadcast %520 : f32 to vector<2x256xf32>
    %522 = arith.mulf %521, %519 : vector<2x256xf32>
    %523 = arith.addf %518, %522 : vector<2x256xf32>
    %524 = vector.extract_strided_slice %13 {offsets = [0, 147], sizes = [2, 256], strides = [1, 1]} : vector<2x512xf32> to vector<2x256xf32>
    %c34 = arith.constant 34 : index
    %525 = memref.load %arg2[%c34] : memref<98xf32, #tpu.memory_space<smem>>
    %526 = vector.broadcast %525 : f32 to vector<2x256xf32>
    %527 = arith.mulf %526, %524 : vector<2x256xf32>
    %528 = arith.addf %523, %527 : vector<2x256xf32>
    %529 = vector.extract_strided_slice %13 {offsets = [0, 163], sizes = [2, 256], strides = [1, 1]} : vector<2x512xf32> to vector<2x256xf32>
    %c41 = arith.constant 41 : index
    %530 = memref.load %arg2[%c41] : memref<98xf32, #tpu.memory_space<smem>>
    %531 = vector.broadcast %530 : f32 to vector<2x256xf32>
    %532 = arith.mulf %531, %529 : vector<2x256xf32>
    %533 = arith.addf %528, %532 : vector<2x256xf32>
    %534 = vector.extract_strided_slice %13 {offsets = [0, 179], sizes = [2, 256], strides = [1, 1]} : vector<2x512xf32> to vector<2x256xf32>
    %c48 = arith.constant 48 : index
    %535 = memref.load %arg2[%c48] : memref<98xf32, #tpu.memory_space<smem>>
    %536 = vector.broadcast %535 : f32 to vector<2x256xf32>
    %537 = arith.mulf %536, %534 : vector<2x256xf32>
    %538 = arith.addf %533, %537 : vector<2x256xf32>
    %539 = vector.extract_strided_slice %14 {offsets = [0, 83], sizes = [2, 256], strides = [1, 1]} : vector<2x512xf32> to vector<2x256xf32>
    %c55 = arith.constant 55 : index
    %540 = memref.load %arg2[%c55] : memref<98xf32, #tpu.memory_space<smem>>
    %541 = vector.broadcast %540 : f32 to vector<2x256xf32>
    %542 = arith.mulf %541, %539 : vector<2x256xf32>
    %543 = arith.addf %538, %542 : vector<2x256xf32>
    %544 = vector.extract_strided_slice %14 {offsets = [0, 99], sizes = [2, 256], strides = [1, 1]} : vector<2x512xf32> to vector<2x256xf32>
    %c62 = arith.constant 62 : index
    %545 = memref.load %arg2[%c62] : memref<98xf32, #tpu.memory_space<smem>>
    %546 = vector.broadcast %545 : f32 to vector<2x256xf32>
    %547 = arith.mulf %546, %544 : vector<2x256xf32>
    %548 = arith.addf %543, %547 : vector<2x256xf32>
    %549 = vector.extract_strided_slice %14 {offsets = [0, 115], sizes = [2, 256], strides = [1, 1]} : vector<2x512xf32> to vector<2x256xf32>
    %c69 = arith.constant 69 : index
    %550 = memref.load %arg2[%c69] : memref<98xf32, #tpu.memory_space<smem>>
    %551 = vector.broadcast %550 : f32 to vector<2x256xf32>
    %552 = arith.mulf %551, %549 : vector<2x256xf32>
    %553 = arith.addf %548, %552 : vector<2x256xf32>
    %554 = vector.extract_strided_slice %14 {offsets = [0, 131], sizes = [2, 256], strides = [1, 1]} : vector<2x512xf32> to vector<2x256xf32>
    %c76 = arith.constant 76 : index
    %555 = memref.load %arg2[%c76] : memref<98xf32, #tpu.memory_space<smem>>
    %556 = vector.broadcast %555 : f32 to vector<2x256xf32>
    %557 = arith.mulf %556, %554 : vector<2x256xf32>
    %558 = arith.addf %553, %557 : vector<2x256xf32>
    %559 = vector.extract_strided_slice %14 {offsets = [0, 147], sizes = [2, 256], strides = [1, 1]} : vector<2x512xf32> to vector<2x256xf32>
    %c83 = arith.constant 83 : index
    %560 = memref.load %arg2[%c83] : memref<98xf32, #tpu.memory_space<smem>>
    %561 = vector.broadcast %560 : f32 to vector<2x256xf32>
    %562 = arith.mulf %561, %559 : vector<2x256xf32>
    %563 = arith.addf %558, %562 : vector<2x256xf32>
    %564 = vector.extract_strided_slice %14 {offsets = [0, 163], sizes = [2, 256], strides = [1, 1]} : vector<2x512xf32> to vector<2x256xf32>
    %c90 = arith.constant 90 : index
    %565 = memref.load %arg2[%c90] : memref<98xf32, #tpu.memory_space<smem>>
    %566 = vector.broadcast %565 : f32 to vector<2x256xf32>
    %567 = arith.mulf %566, %564 : vector<2x256xf32>
    %568 = arith.addf %563, %567 : vector<2x256xf32>
    %569 = vector.extract_strided_slice %14 {offsets = [0, 179], sizes = [2, 256], strides = [1, 1]} : vector<2x512xf32> to vector<2x256xf32>
    %c97 = arith.constant 97 : index
    %570 = memref.load %arg2[%c97] : memref<98xf32, #tpu.memory_space<smem>>
    %571 = vector.broadcast %570 : f32 to vector<2x256xf32>
    %572 = arith.mulf %571, %569 : vector<2x256xf32>
    %573 = arith.addf %568, %572 : vector<2x256xf32>
    %c3_i32 = arith.constant 3 : i32
    %574 = vector.broadcast %c3_i32 : i32 to vector<1x256xi32>
    %575 = arith.addi %17, %574 : vector<1x256xi32>
    %c0_i32_25 = arith.constant 0 : i32
    %576 = vector.broadcast %c0_i32_25 : i32 to vector<1x256xi32>
    %577 = arith.cmpi sge, %575, %576 : vector<1x256xi32>
    %c3_i32_26 = arith.constant 3 : i32
    %578 = vector.broadcast %c3_i32_26 : i32 to vector<1x256xi32>
    %579 = arith.addi %17, %578 : vector<1x256xi32>
    %c16_i32_27 = arith.constant 16 : i32
    %580 = vector.broadcast %c16_i32_27 : i32 to vector<1x256xi32>
    %581 = arith.cmpi slt, %579, %580 : vector<1x256xi32>
    %582 = arith.andi %577, %581 : vector<1x256xi1>
    %cst_28 = arith.constant 0.000000e+00 : f32
    %583 = vector.shape_cast %582 : vector<1x256xi1> to vector<1x256xi1>
    %584 = vector.broadcast %583 : vector<1x256xi1> to vector<2x256xi1>
    %585 = vector.broadcast %cst_28 : f32 to vector<2x256xf32>
    %586 = arith.select %584, %573, %585 : vector<2x256xi1>, vector<2x256xf32>
    %587 = arith.addf %504, %586 : vector<2x256xf32>
    %588 = arith.negf %587 : vector<2x256xf32>
    %589 = math.exp %588 : vector<2x256xf32>
    %cst_29 = arith.constant 1.000000e+00 : f32
    %590 = vector.broadcast %cst_29 : f32 to vector<2x256xf32>
    %591 = arith.addf %590, %589 : vector<2x256xf32>
    %592 = arith.divf %590, %591 : vector<2x256xf32>
    %c0_30 = arith.constant 0 : index
    %c0_31 = arith.constant 0 : index
    %593 = vector.load %arg1[%c0_30, %c0_31] : memref<2x1024xf32, #tpu.memory_space<vmem>>, vector<2x256xf32>
    %594 = arith.mulf %593, %592 : vector<2x256xf32>
    %c0_32 = arith.constant 0 : index
    %c0_33 = arith.constant 0 : index
    %595 = vector.load %arg4[%c0_32, %c0_33] : memref<2x1024xf32, #tpu.memory_space<vmem>>, vector<2x256xf32>
    tpu.vector_store %arg4[%c0_32, %c0_33], %594 {strides = array<i32>} : memref<2x1024xf32, #tpu.memory_space<vmem>>, vector<2x256xf32>,
    %c0_34 = arith.constant 0 : index
    %c256_35 = arith.constant 256 : index
    %596 = vector.load %arg1[%c0_34, %c256_35] : memref<2x1024xf32, #tpu.memory_space<vmem>>, vector<2x256xf32>
    %597 = arith.mulf %596, %592 : vector<2x256xf32>
    %c0_36 = arith.constant 0 : index
    %c256_37 = arith.constant 256 : index
    %598 = vector.load %arg4[%c0_36, %c256_37] : memref<2x1024xf32, #tpu.memory_space<vmem>>, vector<2x256xf32>
    tpu.vector_store %arg4[%c0_36, %c256_37], %597 {strides = array<i32>} : memref<2x1024xf32, #tpu.memory_space<vmem>>, vector<2x256xf32>,
    %c0_38 = arith.constant 0 : index
    %c512_39 = arith.constant 512 : index
    %599 = vector.load %arg1[%c0_38, %c512_39] : memref<2x1024xf32, #tpu.memory_space<vmem>>, vector<2x256xf32>
    %600 = arith.mulf %599, %592 : vector<2x256xf32>
    %c0_40 = arith.constant 0 : index
    %c512_41 = arith.constant 512 : index
    %601 = vector.load %arg4[%c0_40, %c512_41] : memref<2x1024xf32, #tpu.memory_space<vmem>>, vector<2x256xf32>
    tpu.vector_store %arg4[%c0_40, %c512_41], %600 {strides = array<i32>} : memref<2x1024xf32, #tpu.memory_space<vmem>>, vector<2x256xf32>,
    %c0_42 = arith.constant 0 : index
    %c768_43 = arith.constant 768 : index
    %602 = vector.load %arg1[%c0_42, %c768_43] : memref<2x1024xf32, #tpu.memory_space<vmem>>, vector<2x256xf32>
    %603 = arith.mulf %602, %592 : vector<2x256xf32>
    %c0_44 = arith.constant 0 : index
    %c768_45 = arith.constant 768 : index
    %604 = vector.load %arg4[%c0_44, %c768_45] : memref<2x1024xf32, #tpu.memory_space<vmem>>, vector<2x256xf32>
    tpu.vector_store %arg4[%c0_44, %c768_45], %603 {strides = array<i32>} : memref<2x1024xf32, #tpu.memory_space<vmem>>, vector<2x256xf32>,
    return
  }
  func.func @transform_0(%arg0: i32) -> (i32, i32) {
    %c0_i32 = arith.constant 0 : i32
    %c0_i32_0 = arith.constant 0 : i32
    return %arg0, %c0_i32 : i32, i32
  }
  func.func @transform_1(%arg0: i32) -> i32 {
    %c0_i32 = arith.constant 0 : i32
    %c0_i32_0 = arith.constant 0 : i32
    return %c0_i32 : i32
  }
  func.func @transform_2(%arg0: i32) -> i32 {
    %c0_i32 = arith.constant 0 : i32
    %c0_i32_0 = arith.constant 0 : i32
    return %c0_i32 : i32
  }
  func.func @transform_3(%arg0: i32) -> (i32, i32) {
    %c0_i32 = arith.constant 0 : i32
    %c0_i32_0 = arith.constant 0 : i32
    return %arg0, %c0_i32 : i32, i32
  }
}

</mosaic_0001>

<llo_original>
// kernel: tpu_custom_call.1
$region0: #{tpu_custom_call.1}
  #allocation0 [shape = 'u32[]', space=smem, size = 0x4, offset = 0x4, fixed_abs, tag = 'smem constant byte address 0x4 - core index']
  #allocation1 [shape = 'u32[72,128]{1,0:T(1,128)}', space=vmem, size = 0x9000, scoped, tag = 'internal scratch']
  #allocation2 [shape = 'f32[1]{0:T(128)S(6)}', space=smem, size = 0x200, scoped, tag = 'scoped memory for tpu_custom_call.1']
  %s0 = inlined_call_operand.hbm [shape: f32[2,1024], index: 0, kind: input, shape index: {}]
  %s1 = inlined_call_operand.vmem [shape: f32[98], index: 1, kind: input, shape index: {}]
  %s2 = inlined_call_operand.<no memory space> [shape: f32[1], index: 2, kind: input, shape index: {}]
  %s3 = inlined_call_operand.hbm [shape: f32[2,1024], index: 3, kind: output, shape index: {}]
  %s4 = sld [smem:[#allocation0]]
  $region30: #{tpu_custom_call.1} parent=0
    _
  %s6 = ssub.s32 1, %s4
  %s7 = scalar_select 0, %s6, %s4
  %8 = sst [smem:[#allocation2]] %s2
  $region1: #{tpu_custom_call.1} parent=0
    #allocation3 [shape = 'u8[8192]{0}', space=vmem, size = 0x2000, scoped, tag = 'input window, operand 0, single buffered']
    #allocation4 [shape = 's32[1]{0}', space=sflag, size = 0x4, scoped, tag = 'scoped memory for tpu_custom_call.1']
    #allocation5 [shape = 's32[1]{0}', space=sflag, size = 0x4, scoped, tag = 'scoped memory for tpu_custom_call.1']
    #allocation6 [shape = 's32[1]{0}', space=sflag, size = 0x4, scoped, tag = 'scoped memory for tpu_custom_call.1']
    #allocation7 [shape = 'u8[512]{0}', space=smem, size = 0x200, scoped, tag = 'input window, operand 1, single buffered']
    #allocation8 [shape = 'u8[8192]{0}', space=vmem, size = 0x2000, scoped, tag = 'output window, operand 0, single buffered']
    %9 = vsyncpa [#allocation4], 0
    %10 = vsyncpa [#allocation6], 0
    %11 = vsyncpa [#allocation5], 0
    // Predicated region
    $region2: #{tpu_custom_call.1} parent=1 // pred_check
      _
    $region3: #{tpu_custom_call.1} parent=1 // pred_check_branch
      %13 = sbr.rel (0) target = $region5
    $region4: #{tpu_custom_call.1} parent=1 // pred_region
      %15 = vsyncadd [#allocation4], 0
      %s17 = sshll.u32 %s0, 4
      %s18 = int_to_ptr.hbm [resolvable:$true] %s17
      %s19 = sshll.u32 [#allocation3], 4
      %s20 = int_to_ptr.vmem [resolvable:$true] %s19
      %22 = dma.hbm_to_vmem [thread:$0]  %s18, 256, %s20, [#allocation4]
    $region5: #{tpu_custom_call.1} parent=1 // pred_fallthru
      _
    // Predicated region
    $region6: #{tpu_custom_call.1} parent=1 // pred_check
      _
    $region7: #{tpu_custom_call.1} parent=1 // pred_check_branch
      %24 = sbr.rel (0) target = $region9
    $region8: #{tpu_custom_call.1} parent=1 // pred_region
      %26 = vsyncadd [#allocation6], 0
      %s28 = sshll.u32 %s1, 4
      %s29 = int_to_ptr.vmem [resolvable:$true] %s28
      %31 = dma.vmem_to_smem %s29, 16, [#allocation7], [#allocation6]
    $region9: #{tpu_custom_call.1} parent=1 // pred_fallthru
      _
    // Predicated region
    $region10: #{tpu_custom_call.1} parent=1 // pred_check
      _
    $region11: #{tpu_custom_call.1} parent=1 // pred_check_branch
      %33 = sbr.rel (0) target = $region13
    $region12: #{tpu_custom_call.1} parent=1 // pred_region
      _
    $region13: #{tpu_custom_call.1} parent=1 // pred_fallthru
      _
    // Predicated region
    $region14: #{tpu_custom_call.1} parent=1 // pred_check
      _
    $region15: #{tpu_custom_call.1} parent=1 // pred_check_branch
      %35 = sbr.rel (0) target = $region17
    $region16: #{tpu_custom_call.1} parent=1 // pred_region
      %37 = dma.done [#allocation4], 256
    $region17: #{tpu_custom_call.1} parent=1 // pred_fallthru
      _
    // Predicated region
    $region18: #{tpu_custom_call.1} parent=1 // pred_check
      _
    $region19: #{tpu_custom_call.1} parent=1 // pred_check_branch
      %39 = sbr.rel (0) target = $region21
    $region20: #{tpu_custom_call.1} parent=1 // pred_region
      %41 = dma.done [#allocation6], 16
    $region21: #{tpu_custom_call.1} parent=1 // pred_fallthru
      _
    %42 = sfence
    %v43 = vld [vmem:[#allocation3] sm:$0xf]
    %v44 = vld [vmem:[#allocation3 + $0x4] sm:$0xf]
    %v45 = vmax.f32 %v43, %v44
    %v46 = vadd.f32 %v43, %v44
    %v47 = vld [vmem:[#allocation3 + $0x8] sm:$0xf]
    %v48 = vmax.f32 %v45, %v47
    %v49 = vadd.f32 %v46, %v47
    %v50 = vld [vmem:[#allocation3 + $0xc] sm:$0xf]
    %v51 = vmax.f32 %v48, %v50
    %v52 = vadd.f32 %v49, %v50
    %v53 = vmul.f32 %v52, 0.25
    %55 = vst [vmem:[#allocation1] ss:$4 sm:$0xff] %v51
    %v56 = vld.sshfl [vmem:[#allocation1] sm:$0xff pattern:$0x73625140]
    %v57 = vld.sshfl [vmem:[#allocation1 + $0x8] sm:$0xff pattern:$0x73625140]
    %61 = vst [vmem:[#allocation1] ss:$4 sm:$0xff] %v53
    %v62 = vld.sshfl [vmem:[#allocation1] sm:$0xff pattern:$0x73625140]
    %v63 = vld.sshfl [vmem:[#allocation1 + $0x8] sm:$0xff pattern:$0x73625140]
    %v66 = vlaneseq
    %v67 = vand.u32 %v66, 127
    %v68 = vadd.s32 %v67, 128
    %v69 = vand.u32 %v67, 15
    %v70 = vand.u32 %v68, 15
    %s71 = sld [smem:[#allocation2]]
    %v72 = vstv %s71
    %s73 = sld [smem:[#allocation7]]
    %v74 = vstv %s73
    %v75 = vmul.f32 %v74, 0.0
    %v76 = vmul.f32 %v74, %v56
    %v77 = vmul.f32 %v74, %v57
    %s78 = sld [smem:[#allocation7 + $0x7]]
    %v79 = vstv %s78
    %v80 = vmul.f32 %v79, 0.0
    %v81 = vmul.f32 %v79, %v56
    %v82 = vmul.f32 %v79, %v57
    %86 = vrot.lane.b32.xlu0 %v80, 112
    %v87 = vpop.permute.xlu0 %86
    %88 = vrot.lane.b32.xlu0 %v81, 112
    %v89 = vpop.permute.xlu0 %88
    %90 = vrot.lane.b32.xlu0 %v82, 112
    %v91 = vpop.permute.xlu0 %90
    %vm92 = vcmask 916480
    %v93 = vsel %vm92, %v87, %v89
    %v94 = vsel %vm92, %v89, %v91
    %v98 = vadd.f32 %v75, %v93
    %v99 = vadd.f32 %v76, %v94
    %v100 = vadd.f32 %v77, %v91
    %s101 = sld [smem:[#allocation7 + $0xe]]
    %v102 = vstv %s101
    %v103 = vmul.f32 %v102, 0.0
    %v104 = vmul.f32 %v102, %v56
    %v105 = vmul.f32 %v102, %v57
    %109 = vrot.lane.b32.xlu0 %v103, 96
    %v110 = vpop.permute.xlu0 %109
    %111 = vrot.lane.b32.xlu0 %v104, 96
    %v112 = vpop.permute.xlu0 %111
    %113 = vrot.lane.b32.xlu0 %v105, 96
    %v114 = vpop.permute.xlu0 %113
    %vm115 = vcmask 785408
    %v116 = vsel %vm115, %v110, %v112
    %v117 = vsel %vm115, %v112, %v114
    %v121 = vadd.f32 %v98, %v116
    %v122 = vadd.f32 %v99, %v117
    %v123 = vadd.f32 %v100, %v114
    %s124 = sld [smem:[#allocation7 + $0x15]]
    %v125 = vstv %s124
    %v126 = vmul.f32 %v125, 0.0
    %v127 = vmul.f32 %v125, %v56
    %v128 = vmul.f32 %v125, %v57
    %132 = vrot.lane.b32.xlu0 %v126, 80
    %v133 = vpop.permute.xlu0 %132
    %134 = vrot.lane.b32.xlu0 %v127, 80
    %v135 = vpop.permute.xlu0 %134
    %136 = vrot.lane.b32.xlu0 %v128, 80
    %v137 = vpop.permute.xlu0 %136
    %vm138 = vcmask 654336
    %v139 = vsel %vm138, %v133, %v135
    %v140 = vsel %vm138, %v135, %v137
    %v144 = vadd.f32 %v121, %v139
    %v145 = vadd.f32 %v122, %v140
    %v146 = vadd.f32 %v123, %v137
    %s147 = sld [smem:[#allocation7 + $0x1c]]
    %v148 = vstv %s147
    %v149 = vmul.f32 %v148, %v56
    %v150 = vmul.f32 %v148, %v57
    %v151 = vmul.f32 %v148, 0.0
    %155 = vrot.lane.b32.xlu0 %v149, 64
    %v156 = vpop.permute.xlu0 %155
    %157 = vrot.lane.b32.xlu0 %v150, 64
    %v158 = vpop.permute.xlu0 %157
    %159 = vrot.lane.b32.xlu0 %v151, 64
    %v160 = vpop.permute.xlu0 %159
    %vm161 = vcmask 523264
    %v162 = vsel %vm161, %v156, %v158
    %v163 = vsel %vm161, %v158, %v160
    %v167 = vadd.f32 %v144, %v156
    %v168 = vadd.f32 %v145, %v162
    %v169 = vadd.f32 %v146, %v163
    %s170 = sld [smem:[#allocation7 + $0x23]]
    %v171 = vstv %s170
    %v172 = vmul.f32 %v171, %v56
    %v173 = vmul.f32 %v171, %v57
    %v174 = vmul.f32 %v171, 0.0
    %178 = vrot.lane.b32.xlu0 %v172, 48
    %v179 = vpop.permute.xlu0 %178
    %180 = vrot.lane.b32.xlu0 %v173, 48
    %v181 = vpop.permute.xlu0 %180
    %182 = vrot.lane.b32.xlu0 %v174, 48
    %v183 = vpop.permute.xlu0 %182
    %vm184 = vcmask 392192
    %v185 = vsel %vm184, %v179, %v181
    %v186 = vsel %vm184, %v181, %v183
    %v190 = vadd.f32 %v167, %v179
    %v191 = vadd.f32 %v168, %v185
    %v192 = vadd.f32 %v169, %v186
    %s193 = sld [smem:[#allocation7 + $0x2a]]
    %v194 = vstv %s193
    %v195 = vmul.f32 %v194, %v56
    %v196 = vmul.f32 %v194, %v57
    %v197 = vmul.f32 %v194, 0.0
    %201 = vrot.lane.b32.xlu0 %v195, 32
    %v202 = vpop.permute.xlu0 %201
    %203 = vrot.lane.b32.xlu0 %v196, 32
    %v204 = vpop.permute.xlu0 %203
    %205 = vrot.lane.b32.xlu0 %v197, 32
    %v206 = vpop.permute.xlu0 %205
    %vm207 = vcmask 261120
    %v208 = vsel %vm207, %v202, %v204
    %v209 = vsel %vm207, %v204, %v206
    %v213 = vadd.f32 %v190, %v202
    %v214 = vadd.f32 %v191, %v208
    %v215 = vadd.f32 %v192, %v209
    %s216 = sld [smem:[#allocation7 + $0x31]]
    %v217 = vstv %s216
    %v218 = vmul.f32 %v217, 0.0
    %v219 = vmul.f32 %v217, %v62
    %v220 = vmul.f32 %v217, %v63
    %v221 = vadd.f32 %v213, %v218
    %v222 = vadd.f32 %v214, %v219
    %v223 = vadd.f32 %v215, %v220
    %s224 = sld [smem:[#allocation7 + $0x38]]
    %v225 = vstv %s224
    %v226 = vmul.f32 %v225, 0.0
    %v227 = vmul.f32 %v225, %v62
    %v228 = vmul.f32 %v225, %v63
    %232 = vrot.lane.b32.xlu0 %v226, 112
    %v233 = vpop.permute.xlu0 %232
    %234 = vrot.lane.b32.xlu0 %v227, 112
    %v235 = vpop.permute.xlu0 %234
    %236 = vrot.lane.b32.xlu0 %v228, 112
    %v237 = vpop.permute.xlu0 %236
    %v238 = vsel %vm92, %v233, %v235
    %v239 = vsel %vm92, %v235, %v237
    %v243 = vadd.f32 %v221, %v238
    %v244 = vadd.f32 %v222, %v239
    %v245 = vadd.f32 %v223, %v237
    %s246 = sld [smem:[#allocation7 + $0x3f]]
    %v247 = vstv %s246
    %v248 = vmul.f32 %v247, 0.0
    %v249 = vmul.f32 %v247, %v62
    %v250 = vmul.f32 %v247, %v63
    %254 = vrot.lane.b32.xlu0 %v248, 96
    %v255 = vpop.permute.xlu0 %254
    %256 = vrot.lane.b32.xlu0 %v249, 96
    %v257 = vpop.permute.xlu0 %256
    %258 = vrot.lane.b32.xlu0 %v250, 96
    %v259 = vpop.permute.xlu0 %258
    %v260 = vsel %vm115, %v255, %v257
    %v261 = vsel %vm115, %v257, %v259
    %v265 = vadd.f32 %v243, %v260
    %v266 = vadd.f32 %v244, %v261
    %v267 = vadd.f32 %v245, %v259
    %s268 = sld [smem:[#allocation7 + $0x46]]
    %v269 = vstv %s268
    %v270 = vmul.f32 %v269, 0.0
    %v271 = vmul.f32 %v269, %v62
    %v272 = vmul.f32 %v269, %v63
    %276 = vrot.lane.b32.xlu0 %v270, 80
    %v277 = vpop.permute.xlu0 %276
    %278 = vrot.lane.b32.xlu0 %v271, 80
    %v279 = vpop.permute.xlu0 %278
    %280 = vrot.lane.b32.xlu0 %v272, 80
    %v281 = vpop.permute.xlu0 %280
    %v282 = vsel %vm138, %v277, %v279
    %v283 = vsel %vm138, %v279, %v281
    %v287 = vadd.f32 %v265, %v282
    %v288 = vadd.f32 %v266, %v283
    %v289 = vadd.f32 %v267, %v281
    %s290 = sld [smem:[#allocation7 + $0x4d]]
    %v291 = vstv %s290
    %v292 = vmul.f32 %v291, %v62
    %v293 = vmul.f32 %v291, %v63
    %v294 = vmul.f32 %v291, 0.0
    %298 = vrot.lane.b32.xlu0 %v292, 64
    %v299 = vpop.permute.xlu0 %298
    %300 = vrot.lane.b32.xlu0 %v293, 64
    %v301 = vpop.permute.xlu0 %300
    %302 = vrot.lane.b32.xlu0 %v294, 64
    %v303 = vpop.permute.xlu0 %302
    %v304 = vsel %vm161, %v299, %v301
    %v305 = vsel %vm161, %v301, %v303
    %v309 = vadd.f32 %v287, %v299
    %v310 = vadd.f32 %v288, %v304
    %v311 = vadd.f32 %v289, %v305
    %s312 = sld [smem:[#allocation7 + $0x54]]
    %v313 = vstv %s312
    %v314 = vmul.f32 %v313, %v62
    %v315 = vmul.f32 %v313, %v63
    %v316 = vmul.f32 %v313, 0.0
    %320 = vrot.lane.b32.xlu0 %v314, 48
    %v321 = vpop.permute.xlu0 %320
    %322 = vrot.lane.b32.xlu0 %v315, 48
    %v323 = vpop.permute.xlu0 %322
    %324 = vrot.lane.b32.xlu0 %v316, 48
    %v325 = vpop.permute.xlu0 %324
    %v326 = vsel %vm184, %v321, %v323
    %v327 = vsel %vm184, %v323, %v325
    %v331 = vadd.f32 %v309, %v321
    %v332 = vadd.f32 %v310, %v326
    %v333 = vadd.f32 %v311, %v327
    %s334 = sld [smem:[#allocation7 + $0x5b]]
    %v335 = vstv %s334
    %v336 = vmul.f32 %v335, %v62
    %v337 = vmul.f32 %v335, %v63
    %v338 = vmul.f32 %v335, 0.0
    %342 = vrot.lane.b32.xlu0 %v336, 32
    %v343 = vpop.permute.xlu0 %342
    %344 = vrot.lane.b32.xlu0 %v337, 32
    %v345 = vpop.permute.xlu0 %344
    %346 = vrot.lane.b32.xlu0 %v338, 32
    %v347 = vpop.permute.xlu0 %346
    %v348 = vsel %vm207, %v343, %v345
    %v349 = vsel %vm207, %v345, %v347
    %v353 = vadd.f32 %v331, %v343
    %v354 = vadd.f32 %v332, %v348
    %v355 = vadd.f32 %v333, %v349
    %v356 = vadd.s32 %v69, 4294967293
    %v357 = vadd.s32 %v70, 4294967293
    %vm358 = vcmp.ge.s32.totalorder %v356, 0
    %vm359 = vcmp.ge.s32.totalorder %v357, 0
    %vm360 = vcmp.lt.s32.totalorder %v356, 16
    %vm361 = vcmp.lt.s32.totalorder %v357, 16
    %vm362 = vmand %vm358, %vm360
    %vm363 = vmand %vm359, %vm361
    %v364 = vsel %vm362, 1, 0
    %v365 = vsel %vm363, 1, 0
    %vm366 = vcmp.eq.s32.totalorder %v364, 1
    %vm367 = vcmp.eq.s32.totalorder %v365, 1
    %371 = vrot.lane.b32.xlu0 %v353, 51
    %v372 = vpop.permute.xlu0 %371
    %373 = vrot.lane.b32.xlu0 %v354, 51
    %v374 = vpop.permute.xlu0 %373
    %375 = vrot.lane.b32.xlu0 %v355, 51
    %v376 = vpop.permute.xlu0 %375
    %vm377 = vcmask 416768
    %v378 = vsel %vm377, %v372, %v374
    %v379 = vsel %vm377, %v374, %v376
    %v382 = vsel %vm366, %v378, 0.0
    %v383 = vsel %vm367, %v379, 0.0
    %v384 = vadd.f32 %v72, %v382
    %v385 = vadd.f32 %v72, %v383
    %s386 = sld [smem:[#allocation7 + $0x1]]
    %v387 = vstv %s386
    %v388 = vmul.f32 %v387, 0.0
    %v389 = vmul.f32 %v387, %v56
    %v390 = vmul.f32 %v387, %v57
    %s391 = sld [smem:[#allocation7 + $0x8]]
    %v392 = vstv %s391
    %v393 = vmul.f32 %v392, 0.0
    %v394 = vmul.f32 %v392, %v56
    %v395 = vmul.f32 %v392, %v57
    %399 = vrot.lane.b32.xlu0 %v393, 112
    %v400 = vpop.permute.xlu0 %399
    %401 = vrot.lane.b32.xlu0 %v394, 112
    %v402 = vpop.permute.xlu0 %401
    %403 = vrot.lane.b32.xlu0 %v395, 112
    %v404 = vpop.permute.xlu0 %403
    %v405 = vsel %vm92, %v400, %v402
    %v406 = vsel %vm92, %v402, %v404
    %v410 = vadd.f32 %v388, %v405
    %v411 = vadd.f32 %v389, %v406
    %v412 = vadd.f32 %v390, %v404
    %s413 = sld [smem:[#allocation7 + $0xf]]
    %v414 = vstv %s413
    %v415 = vmul.f32 %v414, 0.0
    %v416 = vmul.f32 %v414, %v56
    %v417 = vmul.f32 %v414, %v57
    %421 = vrot.lane.b32.xlu0 %v415, 96
    %v422 = vpop.permute.xlu0 %421
    %423 = vrot.lane.b32.xlu0 %v416, 96
    %v424 = vpop.permute.xlu0 %423
    %425 = vrot.lane.b32.xlu0 %v417, 96
    %v426 = vpop.permute.xlu0 %425
    %v427 = vsel %vm115, %v422, %v424
    %v428 = vsel %vm115, %v424, %v426
    %v432 = vadd.f32 %v410, %v427
    %v433 = vadd.f32 %v411, %v428
    %v434 = vadd.f32 %v412, %v426
    %s435 = sld [smem:[#allocation7 + $0x16]]
    %v436 = vstv %s435
    %v437 = vmul.f32 %v436, 0.0
    %v438 = vmul.f32 %v436, %v56
    %v439 = vmul.f32 %v436, %v57
    %443 = vrot.lane.b32.xlu0 %v437, 80
    %v444 = vpop.permute.xlu0 %443
    %445 = vrot.lane.b32.xlu0 %v438, 80
    %v446 = vpop.permute.xlu0 %445
    %447 = vrot.lane.b32.xlu0 %v439, 80
    %v448 = vpop.permute.xlu0 %447
    %v449 = vsel %vm138, %v444, %v446
    %v450 = vsel %vm138, %v446, %v448
    %v454 = vadd.f32 %v432, %v449
    %v455 = vadd.f32 %v433, %v450
    %v456 = vadd.f32 %v434, %v448
    %s457 = sld [smem:[#allocation7 + $0x1d]]
    %v458 = vstv %s457
    %v459 = vmul.f32 %v458, %v56
    %v460 = vmul.f32 %v458, %v57
    %v461 = vmul.f32 %v458, 0.0
    %465 = vrot.lane.b32.xlu0 %v459, 64
    %v466 = vpop.permute.xlu0 %465
    %467 = vrot.lane.b32.xlu0 %v460, 64
    %v468 = vpop.permute.xlu0 %467
    %469 = vrot.lane.b32.xlu0 %v461, 64
    %v470 = vpop.permute.xlu0 %469
    %v471 = vsel %vm161, %v466, %v468
    %v472 = vsel %vm161, %v468, %v470
    %v476 = vadd.f32 %v454, %v466
    %v477 = vadd.f32 %v455, %v471
    %v478 = vadd.f32 %v456, %v472
    %s479 = sld [smem:[#allocation7 + $0x24]]
    %v480 = vstv %s479
    %v481 = vmul.f32 %v480, %v56
    %v482 = vmul.f32 %v480, %v57
    %v483 = vmul.f32 %v480, 0.0
    %487 = vrot.lane.b32.xlu0 %v481, 48
    %v488 = vpop.permute.xlu0 %487
    %489 = vrot.lane.b32.xlu0 %v482, 48
    %v490 = vpop.permute.xlu0 %489
    %491 = vrot.lane.b32.xlu0 %v483, 48
    %v492 = vpop.permute.xlu0 %491
    %v493 = vsel %vm184, %v488, %v490
    %v494 = vsel %vm184, %v490, %v492
    %v498 = vadd.f32 %v476, %v488
    %v499 = vadd.f32 %v477, %v493
    %v500 = vadd.f32 %v478, %v494
    %s501 = sld [smem:[#allocation7 + $0x2b]]
    %v502 = vstv %s501
    %v503 = vmul.f32 %v502, %v56
    %v504 = vmul.f32 %v502, %v57
    %v505 = vmul.f32 %v502, 0.0
    %509 = vrot.lane.b32.xlu0 %v503, 32
    %v510 = vpop.permute.xlu0 %509
    %511 = vrot.lane.b32.xlu0 %v504, 32
    %v512 = vpop.permute.xlu0 %511
    %513 = vrot.lane.b32.xlu0 %v505, 32
    %v514 = vpop.permute.xlu0 %513
    %v515 = vsel %vm207, %v510, %v512
    %v516 = vsel %vm207, %v512, %v514
    %v520 = vadd.f32 %v498, %v510
    %v521 = vadd.f32 %v499, %v515
    %v522 = vadd.f32 %v500, %v516
    %s523 = sld [smem:[#allocation7 + $0x32]]
    %v524 = vstv %s523
    %v525 = vmul.f32 %v524, 0.0
    %v526 = vmul.f32 %v524, %v62
    %v527 = vmul.f32 %v524, %v63
    %v528 = vadd.f32 %v520, %v525
    %v529 = vadd.f32 %v521, %v526
    %v530 = vadd.f32 %v522, %v527
    %s531 = sld [smem:[#allocation7 + $0x39]]
    %v532 = vstv %s531
    %v533 = vmul.f32 %v532, 0.0
    %v534 = vmul.f32 %v532, %v62
    %v535 = vmul.f32 %v532, %v63
    %539 = vrot.lane.b32.xlu0 %v533, 112
    %v540 = vpop.permute.xlu0 %539
    %541 = vrot.lane.b32.xlu0 %v534, 112
    %v542 = vpop.permute.xlu0 %541
    %543 = vrot.lane.b32.xlu0 %v535, 112
    %v544 = vpop.permute.xlu0 %543
    %v545 = vsel %vm92, %v540, %v542
    %v546 = vsel %vm92, %v542, %v544
    %v550 = vadd.f32 %v528, %v545
    %v551 = vadd.f32 %v529, %v546
    %v552 = vadd.f32 %v530, %v544
    %s553 = sld [smem:[#allocation7 + $0x40]]
    %v554 = vstv %s553
    %v555 = vmul.f32 %v554, 0.0
    %v556 = vmul.f32 %v554, %v62
    %v557 = vmul.f32 %v554, %v63
    %561 = vrot.lane.b32.xlu0 %v555, 96
    %v562 = vpop.permute.xlu0 %561
    %563 = vrot.lane.b32.xlu0 %v556, 96
    %v564 = vpop.permute.xlu0 %563
    %565 = vrot.lane.b32.xlu0 %v557, 96
    %v566 = vpop.permute.xlu0 %565
    %v567 = vsel %vm115, %v562, %v564
    %v568 = vsel %vm115, %v564, %v566
    %v572 = vadd.f32 %v550, %v567
    %v573 = vadd.f32 %v551, %v568
    %v574 = vadd.f32 %v552, %v566
    %s575 = sld [smem:[#allocation7 + $0x47]]
    %v576 = vstv %s575
    %v577 = vmul.f32 %v576, 0.0
    %v578 = vmul.f32 %v576, %v62
    %v579 = vmul.f32 %v576, %v63
    %583 = vrot.lane.b32.xlu0 %v577, 80
    %v584 = vpop.permute.xlu0 %583
    %585 = vrot.lane.b32.xlu0 %v578, 80
    %v586 = vpop.permute.xlu0 %585
    %587 = vrot.lane.b32.xlu0 %v579, 80
    %v588 = vpop.permute.xlu0 %587
    %v589 = vsel %vm138, %v584, %v586
    %v590 = vsel %vm138, %v586, %v588
    %v594 = vadd.f32 %v572, %v589
    %v595 = vadd.f32 %v573, %v590
    %v596 = vadd.f32 %v574, %v588
    %s597 = sld [smem:[#allocation7 + $0x4e]]
    %v598 = vstv %s597
    %v599 = vmul.f32 %v598, %v62
    %v600 = vmul.f32 %v598, %v63
    %v601 = vmul.f32 %v598, 0.0
    %605 = vrot.lane.b32.xlu0 %v599, 64
    %v606 = vpop.permute.xlu0 %605
    %607 = vrot.lane.b32.xlu0 %v600, 64
    %v608 = vpop.permute.xlu0 %607
    %609 = vrot.lane.b32.xlu0 %v601, 64
    %v610 = vpop.permute.xlu0 %609
    %v611 = vsel %vm161, %v606, %v608
    %v612 = vsel %vm161, %v608, %v610
    %v616 = vadd.f32 %v594, %v606
    %v617 = vadd.f32 %v595, %v611
    %v618 = vadd.f32 %v596, %v612
    %s619 = sld [smem:[#allocation7 + $0x55]]
    %v620 = vstv %s619
    %v621 = vmul.f32 %v620, %v62
    %v622 = vmul.f32 %v620, %v63
    %v623 = vmul.f32 %v620, 0.0
    %627 = vrot.lane.b32.xlu0 %v621, 48
    %v628 = vpop.permute.xlu0 %627
    %629 = vrot.lane.b32.xlu0 %v622, 48
    %v630 = vpop.permute.xlu0 %629
    %631 = vrot.lane.b32.xlu0 %v623, 48
    %v632 = vpop.permute.xlu0 %631
    %v633 = vsel %vm184, %v628, %v630
    %v634 = vsel %vm184, %v630, %v632
    %v638 = vadd.f32 %v616, %v628
    %v639 = vadd.f32 %v617, %v633
    %v640 = vadd.f32 %v618, %v634
    %s641 = sld [smem:[#allocation7 + $0x5c]]
    %v642 = vstv %s641
    %v643 = vmul.f32 %v642, %v62
    %v644 = vmul.f32 %v642, %v63
    %v645 = vmul.f32 %v642, 0.0
    %649 = vrot.lane.b32.xlu0 %v643, 32
    %v650 = vpop.permute.xlu0 %649
    %651 = vrot.lane.b32.xlu0 %v644, 32
    %v652 = vpop.permute.xlu0 %651
    %653 = vrot.lane.b32.xlu0 %v645, 32
    %v654 = vpop.permute.xlu0 %653
    %v655 = vsel %vm207, %v650, %v652
    %v656 = vsel %vm207, %v652, %v654
    %v660 = vadd.f32 %v638, %v650
    %v661 = vadd.f32 %v639, %v655
    %v662 = vadd.f32 %v640, %v656
    %v663 = vadd.s32 %v69, 4294967294
    %v664 = vadd.s32 %v70, 4294967294
    %vm665 = vcmp.ge.s32.totalorder %v663, 0
    %vm666 = vcmp.ge.s32.totalorder %v664, 0
    %vm667 = vcmp.lt.s32.totalorder %v663, 16
    %vm668 = vcmp.lt.s32.totalorder %v664, 16
    %vm669 = vmand %vm665, %vm667
    %vm670 = vmand %vm666, %vm668
    %v671 = vsel %vm669, 1, 0
    %v672 = vsel %vm670, 1, 0
    %vm673 = vcmp.eq.s32.totalorder %v671, 1
    %vm674 = vcmp.eq.s32.totalorder %v672, 1
    %678 = vrot.lane.b32.xlu0 %v660, 50
    %v679 = vpop.permute.xlu0 %678
    %680 = vrot.lane.b32.xlu0 %v661, 50
    %v681 = vpop.permute.xlu0 %680
    %682 = vrot.lane.b32.xlu0 %v662, 50
    %v683 = vpop.permute.xlu0 %682
    %vm684 = vcmask 408576
    %v685 = vsel %vm684, %v679, %v681
    %v686 = vsel %vm684, %v681, %v683
    %v689 = vsel %vm673, %v685, 0.0
    %v690 = vsel %vm674, %v686, 0.0
    %v691 = vadd.f32 %v384, %v689
    %v692 = vadd.f32 %v385, %v690
    %s693 = sld [smem:[#allocation7 + $0x2]]
    %v694 = vstv %s693
    %v695 = vmul.f32 %v694, 0.0
    %v696 = vmul.f32 %v694, %v56
    %v697 = vmul.f32 %v694, %v57
    %s698 = sld [smem:[#allocation7 + $0x9]]
    %v699 = vstv %s698
    %v700 = vmul.f32 %v699, 0.0
    %v701 = vmul.f32 %v699, %v56
    %v702 = vmul.f32 %v699, %v57
    %706 = vrot.lane.b32.xlu0 %v700, 112
    %v707 = vpop.permute.xlu0 %706
    %708 = vrot.lane.b32.xlu0 %v701, 112
    %v709 = vpop.permute.xlu0 %708
    %710 = vrot.lane.b32.xlu0 %v702, 112
    %v711 = vpop.permute.xlu0 %710
    %v712 = vsel %vm92, %v707, %v709
    %v713 = vsel %vm92, %v709, %v711
    %v717 = vadd.f32 %v695, %v712
    %v718 = vadd.f32 %v696, %v713
    %v719 = vadd.f32 %v697, %v711
    %s720 = sld [smem:[#allocation7 + $0x10]]
    %v721 = vstv %s720
    %v722 = vmul.f32 %v721, 0.0
    %v723 = vmul.f32 %v721, %v56
    %v724 = vmul.f32 %v721, %v57
    %728 = vrot.lane.b32.xlu0 %v722, 96
    %v729 = vpop.permute.xlu0 %728
    %730 = vrot.lane.b32.xlu0 %v723, 96
    %v731 = vpop.permute.xlu0 %730
    %732 = vrot.lane.b32.xlu0 %v724, 96
    %v733 = vpop.permute.xlu0 %732
    %v734 = vsel %vm115, %v729, %v731
    %v735 = vsel %vm115, %v731, %v733
    %v739 = vadd.f32 %v717, %v734
    %v740 = vadd.f32 %v718, %v735
    %v741 = vadd.f32 %v719, %v733
    %s742 = sld [smem:[#allocation7 + $0x17]]
    %v743 = vstv %s742
    %v744 = vmul.f32 %v743, 0.0
    %v745 = vmul.f32 %v743, %v56
    %v746 = vmul.f32 %v743, %v57
    %750 = vrot.lane.b32.xlu0 %v744, 80
    %v751 = vpop.permute.xlu0 %750
    %752 = vrot.lane.b32.xlu0 %v745, 80
    %v753 = vpop.permute.xlu0 %752
    %754 = vrot.lane.b32.xlu0 %v746, 80
    %v755 = vpop.permute.xlu0 %754
    %v756 = vsel %vm138, %v751, %v753
    %v757 = vsel %vm138, %v753, %v755
    %v761 = vadd.f32 %v739, %v756
    %v762 = vadd.f32 %v740, %v757
    %v763 = vadd.f32 %v741, %v755
    %s764 = sld [smem:[#allocation7 + $0x1e]]
    %v765 = vstv %s764
    %v766 = vmul.f32 %v765, %v56
    %v767 = vmul.f32 %v765, %v57
    %v768 = vmul.f32 %v765, 0.0
    %772 = vrot.lane.b32.xlu0 %v766, 64
    %v773 = vpop.permute.xlu0 %772
    %774 = vrot.lane.b32.xlu0 %v767, 64
    %v775 = vpop.permute.xlu0 %774
    %776 = vrot.lane.b32.xlu0 %v768, 64
    %v777 = vpop.permute.xlu0 %776
    %v778 = vsel %vm161, %v773, %v775
    %v779 = vsel %vm161, %v775, %v777
    %v783 = vadd.f32 %v761, %v773
    %v784 = vadd.f32 %v762, %v778
    %v785 = vadd.f32 %v763, %v779
    %s786 = sld [smem:[#allocation7 + $0x25]]
    %v787 = vstv %s786
    %v788 = vmul.f32 %v787, %v56
    %v789 = vmul.f32 %v787, %v57
    %v790 = vmul.f32 %v787, 0.0
    %794 = vrot.lane.b32.xlu0 %v788, 48
    %v795 = vpop.permute.xlu0 %794
    %796 = vrot.lane.b32.xlu0 %v789, 48
    %v797 = vpop.permute.xlu0 %796
    %798 = vrot.lane.b32.xlu0 %v790, 48
    %v799 = vpop.permute.xlu0 %798
    %v800 = vsel %vm184, %v795, %v797
    %v801 = vsel %vm184, %v797, %v799
    %v805 = vadd.f32 %v783, %v795
    %v806 = vadd.f32 %v784, %v800
    %v807 = vadd.f32 %v785, %v801
    %s808 = sld [smem:[#allocation7 + $0x2c]]
    %v809 = vstv %s808
    %v810 = vmul.f32 %v809, %v56
    %v811 = vmul.f32 %v809, %v57
    %v812 = vmul.f32 %v809, 0.0
    %816 = vrot.lane.b32.xlu0 %v810, 32
    %v817 = vpop.permute.xlu0 %816
    %818 = vrot.lane.b32.xlu0 %v811, 32
    %v819 = vpop.permute.xlu0 %818
    %820 = vrot.lane.b32.xlu0 %v812, 32
    %v821 = vpop.permute.xlu0 %820
    %v822 = vsel %vm207, %v817, %v819
    %v823 = vsel %vm207, %v819, %v821
    %v827 = vadd.f32 %v805, %v817
    %v828 = vadd.f32 %v806, %v822
    %v829 = vadd.f32 %v807, %v823
    %s830 = sld [smem:[#allocation7 + $0x33]]
    %v831 = vstv %s830
    %v832 = vmul.f32 %v831, 0.0
    %v833 = vmul.f32 %v831, %v62
    %v834 = vmul.f32 %v831, %v63
    %v835 = vadd.f32 %v827, %v832
    %v836 = vadd.f32 %v828, %v833
    %v837 = vadd.f32 %v829, %v834
    %s838 = sld [smem:[#allocation7 + $0x3a]]
    %v839 = vstv %s838
    %v840 = vmul.f32 %v839, 0.0
    %v841 = vmul.f32 %v839, %v62
    %v842 = vmul.f32 %v839, %v63
    %846 = vrot.lane.b32.xlu0 %v840, 112
    %v847 = vpop.permute.xlu0 %846
    %848 = vrot.lane.b32.xlu0 %v841, 112
    %v849 = vpop.permute.xlu0 %848
    %850 = vrot.lane.b32.xlu0 %v842, 112
    %v851 = vpop.permute.xlu0 %850
    %v852 = vsel %vm92, %v847, %v849
    %v853 = vsel %vm92, %v849, %v851
    %v857 = vadd.f32 %v835, %v852
    %v858 = vadd.f32 %v836, %v853
    %v859 = vadd.f32 %v837, %v851
    %s860 = sld [smem:[#allocation7 + $0x41]]
    %v861 = vstv %s860
    %v862 = vmul.f32 %v861, 0.0
    %v863 = vmul.f32 %v861, %v62
    %v864 = vmul.f32 %v861, %v63
    %868 = vrot.lane.b32.xlu0 %v862, 96
    %v869 = vpop.permute.xlu0 %868
    %870 = vrot.lane.b32.xlu0 %v863, 96
    %v871 = vpop.permute.xlu0 %870
    %872 = vrot.lane.b32.xlu0 %v864, 96
    %v873 = vpop.permute.xlu0 %872
    %v874 = vsel %vm115, %v869, %v871
    %v875 = vsel %vm115, %v871, %v873
    %v879 = vadd.f32 %v857, %v874
    %v880 = vadd.f32 %v858, %v875
    %v881 = vadd.f32 %v859, %v873
    %s882 = sld [smem:[#allocation7 + $0x48]]
    %v883 = vstv %s882
    %v884 = vmul.f32 %v883, 0.0
    %v885 = vmul.f32 %v883, %v62
    %v886 = vmul.f32 %v883, %v63
    %890 = vrot.lane.b32.xlu0 %v884, 80
    %v891 = vpop.permute.xlu0 %890
    %892 = vrot.lane.b32.xlu0 %v885, 80
    %v893 = vpop.permute.xlu0 %892
    %894 = vrot.lane.b32.xlu0 %v886, 80
    %v895 = vpop.permute.xlu0 %894
    %v896 = vsel %vm138, %v891, %v893
    %v897 = vsel %vm138, %v893, %v895
    %v901 = vadd.f32 %v879, %v896
    %v902 = vadd.f32 %v880, %v897
    %v903 = vadd.f32 %v881, %v895
    %s904 = sld [smem:[#allocation7 + $0x4f]]
    %v905 = vstv %s904
    %v906 = vmul.f32 %v905, %v62
    %v907 = vmul.f32 %v905, %v63
    %v908 = vmul.f32 %v905, 0.0
    %912 = vrot.lane.b32.xlu0 %v906, 64
    %v913 = vpop.permute.xlu0 %912
    %914 = vrot.lane.b32.xlu0 %v907, 64
    %v915 = vpop.permute.xlu0 %914
    %916 = vrot.lane.b32.xlu0 %v908, 64
    %v917 = vpop.permute.xlu0 %916
    %v918 = vsel %vm161, %v913, %v915
    %v919 = vsel %vm161, %v915, %v917
    %v923 = vadd.f32 %v901, %v913
    %v924 = vadd.f32 %v902, %v918
    %v925 = vadd.f32 %v903, %v919
    %s926 = sld [smem:[#allocation7 + $0x56]]
    %v927 = vstv %s926
    %v928 = vmul.f32 %v927, %v62
    %v929 = vmul.f32 %v927, %v63
    %v930 = vmul.f32 %v927, 0.0
    %934 = vrot.lane.b32.xlu0 %v928, 48
    %v935 = vpop.permute.xlu0 %934
    %936 = vrot.lane.b32.xlu0 %v929, 48
    %v937 = vpop.permute.xlu0 %936
    %938 = vrot.lane.b32.xlu0 %v930, 48
    %v939 = vpop.permute.xlu0 %938
    %v940 = vsel %vm184, %v935, %v937
    %v941 = vsel %vm184, %v937, %v939
    %v945 = vadd.f32 %v923, %v935
    %v946 = vadd.f32 %v924, %v940
    %v947 = vadd.f32 %v925, %v941
    %s948 = sld [smem:[#allocation7 + $0x5d]]
    %v949 = vstv %s948
    %v950 = vmul.f32 %v949, %v62
    %v951 = vmul.f32 %v949, %v63
    %v952 = vmul.f32 %v949, 0.0
    %956 = vrot.lane.b32.xlu0 %v950, 32
    %v957 = vpop.permute.xlu0 %956
    %958 = vrot.lane.b32.xlu0 %v951, 32
    %v959 = vpop.permute.xlu0 %958
    %960 = vrot.lane.b32.xlu0 %v952, 32
    %v961 = vpop.permute.xlu0 %960
    %v962 = vsel %vm207, %v957, %v959
    %v963 = vsel %vm207, %v959, %v961
    %v967 = vadd.f32 %v945, %v957
    %v968 = vadd.f32 %v946, %v962
    %v969 = vadd.f32 %v947, %v963
    %v970 = vadd.s32 %v69, 4294967295
    %v971 = vadd.s32 %v70, 4294967295
    %vm972 = vcmp.ge.s32.totalorder %v970, 0
    %vm973 = vcmp.ge.s32.totalorder %v971, 0
    %vm974 = vcmp.lt.s32.totalorder %v970, 16
    %vm975 = vcmp.lt.s32.totalorder %v971, 16
    %vm976 = vmand %vm972, %vm974
    %vm977 = vmand %vm973, %vm975
    %v978 = vsel %vm976, 1, 0
    %v979 = vsel %vm977, 1, 0
    %vm980 = vcmp.eq.s32.totalorder %v978, 1
    %vm981 = vcmp.eq.s32.totalorder %v979, 1
    %985 = vrot.lane.b32.xlu0 %v967, 49
    %v986 = vpop.permute.xlu0 %985
    %987 = vrot.lane.b32.xlu0 %v968, 49
    %v988 = vpop.permute.xlu0 %987
    %989 = vrot.lane.b32.xlu0 %v969, 49
    %v990 = vpop.permute.xlu0 %989
    %vm991 = vcmask 400384
    %v992 = vsel %vm991, %v986, %v988
    %v993 = vsel %vm991, %v988, %v990
    %v996 = vsel %vm980, %v992, 0.0
    %v997 = vsel %vm981, %v993, 0.0
    %v998 = vadd.f32 %v691, %v996
    %v999 = vadd.f32 %v692, %v997
    %s1000 = sld [smem:[#allocation7 + $0x3]]
    %v1001 = vstv %s1000
    %v1002 = vmul.f32 %v1001, 0.0
    %v1003 = vmul.f32 %v1001, %v56
    %v1004 = vmul.f32 %v1001, %v57
    %s1005 = sld [smem:[#allocation7 + $0xa]]
    %v1006 = vstv %s1005
    %v1007 = vmul.f32 %v1006, 0.0
    %v1008 = vmul.f32 %v1006, %v56
    %v1009 = vmul.f32 %v1006, %v57
    %1013 = vrot.lane.b32.xlu0 %v1007, 112
    %v1014 = vpop.permute.xlu0 %1013
    %1015 = vrot.lane.b32.xlu0 %v1008, 112
    %v1016 = vpop.permute.xlu0 %1015
    %1017 = vrot.lane.b32.xlu0 %v1009, 112
    %v1018 = vpop.permute.xlu0 %1017
    %v1019 = vsel %vm92, %v1014, %v1016
    %v1020 = vsel %vm92, %v1016, %v1018
    %v1024 = vadd.f32 %v1002, %v1019
    %v1025 = vadd.f32 %v1003, %v1020
    %v1026 = vadd.f32 %v1004, %v1018
    %s1027 = sld [smem:[#allocation7 + $0x11]]
    %v1028 = vstv %s1027
    %v1029 = vmul.f32 %v1028, 0.0
    %v1030 = vmul.f32 %v1028, %v56
    %v1031 = vmul.f32 %v1028, %v57
    %1035 = vrot.lane.b32.xlu0 %v1029, 96
    %v1036 = vpop.permute.xlu0 %1035
    %1037 = vrot.lane.b32.xlu0 %v1030, 96
    %v1038 = vpop.permute.xlu0 %1037
    %1039 = vrot.lane.b32.xlu0 %v1031, 96
    %v1040 = vpop.permute.xlu0 %1039
    %v1041 = vsel %vm115, %v1036, %v1038
    %v1042 = vsel %vm115, %v1038, %v1040
    %v1046 = vadd.f32 %v1024, %v1041
    %v1047 = vadd.f32 %v1025, %v1042
    %v1048 = vadd.f32 %v1026, %v1040
    %s1049 = sld [smem:[#allocation7 + $0x18]]
    %v1050 = vstv %s1049
    %v1051 = vmul.f32 %v1050, %v56
    %v1052 = vmul.f32 %v1050, %v57
    %1055 = vrot.lane.b32.xlu0 %v1051, 80
    %v1056 = vpop.permute.xlu0 %1055
    %1057 = vrot.lane.b32.xlu0 %v1052, 80
    %v1058 = vpop.permute.xlu0 %1057
    %v1059 = vsel %vm138, %v1056, %v1058
    %v1063 = vadd.f32 %v1046, %v1056
    %v1064 = vadd.f32 %v1047, %v1059
    %v1065 = vadd.f32 %v1048, %v1058
    %s1066 = sld [smem:[#allocation7 + $0x1f]]
    %v1067 = vstv %s1066
    %v1068 = vmul.f32 %v1067, %v56
    %v1069 = vmul.f32 %v1067, %v57
    %v1070 = vmul.f32 %v1067, 0.0
    %1074 = vrot.lane.b32.xlu0 %v1068, 64
    %v1075 = vpop.permute.xlu0 %1074
    %1076 = vrot.lane.b32.xlu0 %v1069, 64
    %v1077 = vpop.permute.xlu0 %1076
    %1078 = vrot.lane.b32.xlu0 %v1070, 64
    %v1079 = vpop.permute.xlu0 %1078
    %v1080 = vsel %vm161, %v1075, %v1077
    %v1081 = vsel %vm161, %v1077, %v1079
    %v1085 = vadd.f32 %v1063, %v1075
    %v1086 = vadd.f32 %v1064, %v1080
    %v1087 = vadd.f32 %v1065, %v1081
    %s1088 = sld [smem:[#allocation7 + $0x26]]
    %v1089 = vstv %s1088
    %v1090 = vmul.f32 %v1089, %v56
    %v1091 = vmul.f32 %v1089, %v57
    %v1092 = vmul.f32 %v1089, 0.0
    %1096 = vrot.lane.b32.xlu0 %v1090, 48
    %v1097 = vpop.permute.xlu0 %1096
    %1098 = vrot.lane.b32.xlu0 %v1091, 48
    %v1099 = vpop.permute.xlu0 %1098
    %1100 = vrot.lane.b32.xlu0 %v1092, 48
    %v1101 = vpop.permute.xlu0 %1100
    %v1102 = vsel %vm184, %v1097, %v1099
    %v1103 = vsel %vm184, %v1099, %v1101
    %v1107 = vadd.f32 %v1085, %v1097
    %v1108 = vadd.f32 %v1086, %v1102
    %v1109 = vadd.f32 %v1087, %v1103
    %s1110 = sld [smem:[#allocation7 + $0x2d]]
    %v1111 = vstv %s1110
    %v1112 = vmul.f32 %v1111, %v56
    %v1113 = vmul.f32 %v1111, %v57
    %v1114 = vmul.f32 %v1111, 0.0
    %1118 = vrot.lane.b32.xlu0 %v1112, 32
    %v1119 = vpop.permute.xlu0 %1118
    %1120 = vrot.lane.b32.xlu0 %v1113, 32
    %v1121 = vpop.permute.xlu0 %1120
    %1122 = vrot.lane.b32.xlu0 %v1114, 32
    %v1123 = vpop.permute.xlu0 %1122
    %v1124 = vsel %vm207, %v1119, %v1121
    %v1125 = vsel %vm207, %v1121, %v1123
    %v1129 = vadd.f32 %v1107, %v1119
    %v1130 = vadd.f32 %v1108, %v1124
    %v1131 = vadd.f32 %v1109, %v1125
    %s1132 = sld [smem:[#allocation7 + $0x34]]
    %v1133 = vstv %s1132
    %v1134 = vmul.f32 %v1133, 0.0
    %v1135 = vmul.f32 %v1133, %v62
    %v1136 = vmul.f32 %v1133, %v63
    %v1137 = vadd.f32 %v1129, %v1134
    %v1138 = vadd.f32 %v1130, %v1135
    %v1139 = vadd.f32 %v1131, %v1136
    %s1140 = sld [smem:[#allocation7 + $0x3b]]
    %v1141 = vstv %s1140
    %v1142 = vmul.f32 %v1141, 0.0
    %v1143 = vmul.f32 %v1141, %v62
    %v1144 = vmul.f32 %v1141, %v63
    %1148 = vrot.lane.b32.xlu0 %v1142, 112
    %v1149 = vpop.permute.xlu0 %1148
    %1150 = vrot.lane.b32.xlu0 %v1143, 112
    %v1151 = vpop.permute.xlu0 %1150
    %1152 = vrot.lane.b32.xlu0 %v1144, 112
    %v1153 = vpop.permute.xlu0 %1152
    %v1154 = vsel %vm92, %v1149, %v1151
    %v1155 = vsel %vm92, %v1151, %v1153
    %v1159 = vadd.f32 %v1137, %v1154
    %v1160 = vadd.f32 %v1138, %v1155
    %v1161 = vadd.f32 %v1139, %v1153
    %s1162 = sld [smem:[#allocation7 + $0x42]]
    %v1163 = vstv %s1162
    %v1164 = vmul.f32 %v1163, 0.0
    %v1165 = vmul.f32 %v1163, %v62
    %v1166 = vmul.f32 %v1163, %v63
    %1170 = vrot.lane.b32.xlu0 %v1164, 96
    %v1171 = vpop.permute.xlu0 %1170
    %1172 = vrot.lane.b32.xlu0 %v1165, 96
    %v1173 = vpop.permute.xlu0 %1172
    %1174 = vrot.lane.b32.xlu0 %v1166, 96
    %v1175 = vpop.permute.xlu0 %1174
    %v1176 = vsel %vm115, %v1171, %v1173
    %v1177 = vsel %vm115, %v1173, %v1175
    %v1181 = vadd.f32 %v1159, %v1176
    %v1182 = vadd.f32 %v1160, %v1177
    %v1183 = vadd.f32 %v1161, %v1175
    %s1184 = sld [smem:[#allocation7 + $0x49]]
    %v1185 = vstv %s1184
    %v1186 = vmul.f32 %v1185, %v62
    %v1187 = vmul.f32 %v1185, %v63
    %1190 = vrot.lane.b32.xlu0 %v1186, 80
    %v1191 = vpop.permute.xlu0 %1190
    %1192 = vrot.lane.b32.xlu0 %v1187, 80
    %v1193 = vpop.permute.xlu0 %1192
    %v1194 = vsel %vm138, %v1191, %v1193
    %v1198 = vadd.f32 %v1181, %v1191
    %v1199 = vadd.f32 %v1182, %v1194
    %v1200 = vadd.f32 %v1183, %v1193
    %s1201 = sld [smem:[#allocation7 + $0x50]]
    %v1202 = vstv %s1201
    %v1203 = vmul.f32 %v1202, %v62
    %v1204 = vmul.f32 %v1202, %v63
    %v1205 = vmul.f32 %v1202, 0.0
    %1209 = vrot.lane.b32.xlu0 %v1203, 64
    %v1210 = vpop.permute.xlu0 %1209
    %1211 = vrot.lane.b32.xlu0 %v1204, 64
    %v1212 = vpop.permute.xlu0 %1211
    %1213 = vrot.lane.b32.xlu0 %v1205, 64
    %v1214 = vpop.permute.xlu0 %1213
    %v1215 = vsel %vm161, %v1210, %v1212
    %v1216 = vsel %vm161, %v1212, %v1214
    %v1220 = vadd.f32 %v1198, %v1210
    %v1221 = vadd.f32 %v1199, %v1215
    %v1222 = vadd.f32 %v1200, %v1216
    %s1223 = sld [smem:[#allocation7 + $0x57]]
    %v1224 = vstv %s1223
    %v1225 = vmul.f32 %v1224, %v62
    %v1226 = vmul.f32 %v1224, %v63
    %v1227 = vmul.f32 %v1224, 0.0
    %1231 = vrot.lane.b32.xlu0 %v1225, 48
    %v1232 = vpop.permute.xlu0 %1231
    %1233 = vrot.lane.b32.xlu0 %v1226, 48
    %v1234 = vpop.permute.xlu0 %1233
    %1235 = vrot.lane.b32.xlu0 %v1227, 48
    %v1236 = vpop.permute.xlu0 %1235
    %v1237 = vsel %vm184, %v1232, %v1234
    %v1238 = vsel %vm184, %v1234, %v1236
    %v1242 = vadd.f32 %v1220, %v1232
    %v1243 = vadd.f32 %v1221, %v1237
    %v1244 = vadd.f32 %v1222, %v1238
    %s1245 = sld [smem:[#allocation7 + $0x5e]]
    %v1246 = vstv %s1245
    %v1247 = vmul.f32 %v1246, %v62
    %v1248 = vmul.f32 %v1246, %v63
    %v1249 = vmul.f32 %v1246, 0.0
    %1253 = vrot.lane.b32.xlu0 %v1247, 32
    %v1254 = vpop.permute.xlu0 %1253
    %1255 = vrot.lane.b32.xlu0 %v1248, 32
    %v1256 = vpop.permute.xlu0 %1255
    %1257 = vrot.lane.b32.xlu0 %v1249, 32
    %v1258 = vpop.permute.xlu0 %1257
    %v1259 = vsel %vm207, %v1254, %v1256
    %v1260 = vsel %vm207, %v1256, %v1258
    %v1264 = vadd.f32 %v1242, %v1254
    %v1265 = vadd.f32 %v1243, %v1259
    %v1266 = vadd.f32 %v1244, %v1260
    %1270 = vrot.lane.b32.xlu0 %v1264, 48
    %v1271 = vpop.permute.xlu0 %1270
    %1272 = vrot.lane.b32.xlu0 %v1265, 48
    %v1273 = vpop.permute.xlu0 %1272
    %1274 = vrot.lane.b32.xlu0 %v1266, 48
    %v1275 = vpop.permute.xlu0 %1274
    %v1276 = vsel %vm184, %v1271, %v1273
    %v1277 = vsel %vm184, %v1273, %v1275
    %v1280 = vadd.f32 %v998, %v1276
    %v1281 = vadd.f32 %v999, %v1277
    %s1282 = sld [smem:[#allocation7 + $0x4]]
    %v1283 = vstv %s1282
    %v1284 = vmul.f32 %v1283, 0.0
    %v1285 = vmul.f32 %v1283, %v56
    %v1286 = vmul.f32 %v1283, %v57
    %s1287 = sld [smem:[#allocation7 + $0xb]]
    %v1288 = vstv %s1287
    %v1289 = vmul.f32 %v1288, 0.0
    %v1290 = vmul.f32 %v1288, %v56
    %v1291 = vmul.f32 %v1288, %v57
    %1295 = vrot.lane.b32.xlu0 %v1289, 112
    %v1296 = vpop.permute.xlu0 %1295
    %1297 = vrot.lane.b32.xlu0 %v1290, 112
    %v1298 = vpop.permute.xlu0 %1297
    %1299 = vrot.lane.b32.xlu0 %v1291, 112
    %v1300 = vpop.permute.xlu0 %1299
    %v1301 = vsel %vm92, %v1296, %v1298
    %v1302 = vsel %vm92, %v1298, %v1300
    %v1306 = vadd.f32 %v1284, %v1301
    %v1307 = vadd.f32 %v1285, %v1302
    %v1308 = vadd.f32 %v1286, %v1300
    %s1309 = sld [smem:[#allocation7 + $0x12]]
    %v1310 = vstv %s1309
    %v1311 = vmul.f32 %v1310, 0.0
    %v1312 = vmul.f32 %v1310, %v56
    %v1313 = vmul.f32 %v1310, %v57
    %1317 = vrot.lane.b32.xlu0 %v1311, 96
    %v1318 = vpop.permute.xlu0 %1317
    %1319 = vrot.lane.b32.xlu0 %v1312, 96
    %v1320 = vpop.permute.xlu0 %1319
    %1321 = vrot.lane.b32.xlu0 %v1313, 96
    %v1322 = vpop.permute.xlu0 %1321
    %v1323 = vsel %vm115, %v1318, %v1320
    %v1324 = vsel %vm115, %v1320, %v1322
    %v1328 = vadd.f32 %v1306, %v1323
    %v1329 = vadd.f32 %v1307, %v1324
    %v1330 = vadd.f32 %v1308, %v1322
    %s1331 = sld [smem:[#allocation7 + $0x19]]
    %v1332 = vstv %s1331
    %v1333 = vmul.f32 %v1332, %v56
    %v1334 = vmul.f32 %v1332, %v57
    %v1335 = vmul.f32 %v1332, 0.0
    %1339 = vrot.lane.b32.xlu0 %v1333, 80
    %v1340 = vpop.permute.xlu0 %1339
    %1341 = vrot.lane.b32.xlu0 %v1334, 80
    %v1342 = vpop.permute.xlu0 %1341
    %1343 = vrot.lane.b32.xlu0 %v1335, 80
    %v1344 = vpop.permute.xlu0 %1343
    %v1345 = vsel %vm138, %v1340, %v1342
    %v1346 = vsel %vm138, %v1342, %v1344
    %v1350 = vadd.f32 %v1328, %v1340
    %v1351 = vadd.f32 %v1329, %v1345
    %v1352 = vadd.f32 %v1330, %v1346
    %s1353 = sld [smem:[#allocation7 + $0x20]]
    %v1354 = vstv %s1353
    %v1355 = vmul.f32 %v1354, %v56
    %v1356 = vmul.f32 %v1354, %v57
    %v1357 = vmul.f32 %v1354, 0.0
    %1361 = vrot.lane.b32.xlu0 %v1355, 64
    %v1362 = vpop.permute.xlu0 %1361
    %1363 = vrot.lane.b32.xlu0 %v1356, 64
    %v1364 = vpop.permute.xlu0 %1363
    %1365 = vrot.lane.b32.xlu0 %v1357, 64
    %v1366 = vpop.permute.xlu0 %1365
    %v1367 = vsel %vm161, %v1362, %v1364
    %v1368 = vsel %vm161, %v1364, %v1366
    %v1372 = vadd.f32 %v1350, %v1362
    %v1373 = vadd.f32 %v1351, %v1367
    %v1374 = vadd.f32 %v1352, %v1368
    %s1375 = sld [smem:[#allocation7 + $0x27]]
    %v1376 = vstv %s1375
    %v1377 = vmul.f32 %v1376, %v56
    %v1378 = vmul.f32 %v1376, %v57
    %v1379 = vmul.f32 %v1376, 0.0
    %1383 = vrot.lane.b32.xlu0 %v1377, 48
    %v1384 = vpop.permute.xlu0 %1383
    %1385 = vrot.lane.b32.xlu0 %v1378, 48
    %v1386 = vpop.permute.xlu0 %1385
    %1387 = vrot.lane.b32.xlu0 %v1379, 48
    %v1388 = vpop.permute.xlu0 %1387
    %v1389 = vsel %vm184, %v1384, %v1386
    %v1390 = vsel %vm184, %v1386, %v1388
    %v1394 = vadd.f32 %v1372, %v1384
    %v1395 = vadd.f32 %v1373, %v1389
    %v1396 = vadd.f32 %v1374, %v1390
    %s1397 = sld [smem:[#allocation7 + $0x2e]]
    %v1398 = vstv %s1397
    %v1399 = vmul.f32 %v1398, %v56
    %v1400 = vmul.f32 %v1398, %v57
    %v1401 = vmul.f32 %v1398, 0.0
    %1405 = vrot.lane.b32.xlu0 %v1399, 32
    %v1406 = vpop.permute.xlu0 %1405
    %1407 = vrot.lane.b32.xlu0 %v1400, 32
    %v1408 = vpop.permute.xlu0 %1407
    %1409 = vrot.lane.b32.xlu0 %v1401, 32
    %v1410 = vpop.permute.xlu0 %1409
    %v1411 = vsel %vm207, %v1406, %v1408
    %v1412 = vsel %vm207, %v1408, %v1410
    %v1416 = vadd.f32 %v1394, %v1406
    %v1417 = vadd.f32 %v1395, %v1411
    %v1418 = vadd.f32 %v1396, %v1412
    %s1419 = sld [smem:[#allocation7 + $0x35]]
    %v1420 = vstv %s1419
    %v1421 = vmul.f32 %v1420, 0.0
    %v1422 = vmul.f32 %v1420, %v62
    %v1423 = vmul.f32 %v1420, %v63
    %v1424 = vadd.f32 %v1416, %v1421
    %v1425 = vadd.f32 %v1417, %v1422
    %v1426 = vadd.f32 %v1418, %v1423
    %s1427 = sld [smem:[#allocation7 + $0x3c]]
    %v1428 = vstv %s1427
    %v1429 = vmul.f32 %v1428, 0.0
    %v1430 = vmul.f32 %v1428, %v62
    %v1431 = vmul.f32 %v1428, %v63
    %1435 = vrot.lane.b32.xlu0 %v1429, 112
    %v1436 = vpop.permute.xlu0 %1435
    %1437 = vrot.lane.b32.xlu0 %v1430, 112
    %v1438 = vpop.permute.xlu0 %1437
    %1439 = vrot.lane.b32.xlu0 %v1431, 112
    %v1440 = vpop.permute.xlu0 %1439
    %v1441 = vsel %vm92, %v1436, %v1438
    %v1442 = vsel %vm92, %v1438, %v1440
    %v1446 = vadd.f32 %v1424, %v1441
    %v1447 = vadd.f32 %v1425, %v1442
    %v1448 = vadd.f32 %v1426, %v1440
    %s1449 = sld [smem:[#allocation7 + $0x43]]
    %v1450 = vstv %s1449
    %v1451 = vmul.f32 %v1450, 0.0
    %v1452 = vmul.f32 %v1450, %v62
    %v1453 = vmul.f32 %v1450, %v63
    %1457 = vrot.lane.b32.xlu0 %v1451, 96
    %v1458 = vpop.permute.xlu0 %1457
    %1459 = vrot.lane.b32.xlu0 %v1452, 96
    %v1460 = vpop.permute.xlu0 %1459
    %1461 = vrot.lane.b32.xlu0 %v1453, 96
    %v1462 = vpop.permute.xlu0 %1461
    %v1463 = vsel %vm115, %v1458, %v1460
    %v1464 = vsel %vm115, %v1460, %v1462
    %v1468 = vadd.f32 %v1446, %v1463
    %v1469 = vadd.f32 %v1447, %v1464
    %v1470 = vadd.f32 %v1448, %v1462
    %s1471 = sld [smem:[#allocation7 + $0x4a]]
    %v1472 = vstv %s1471
    %v1473 = vmul.f32 %v1472, %v62
    %v1474 = vmul.f32 %v1472, %v63
    %v1475 = vmul.f32 %v1472, 0.0
    %1479 = vrot.lane.b32.xlu0 %v1473, 80
    %v1480 = vpop.permute.xlu0 %1479
    %1481 = vrot.lane.b32.xlu0 %v1474, 80
    %v1482 = vpop.permute.xlu0 %1481
    %1483 = vrot.lane.b32.xlu0 %v1475, 80
    %v1484 = vpop.permute.xlu0 %1483
    %v1485 = vsel %vm138, %v1480, %v1482
    %v1486 = vsel %vm138, %v1482, %v1484
    %v1490 = vadd.f32 %v1468, %v1480
    %v1491 = vadd.f32 %v1469, %v1485
    %v1492 = vadd.f32 %v1470, %v1486
    %s1493 = sld [smem:[#allocation7 + $0x51]]
    %v1494 = vstv %s1493
    %v1495 = vmul.f32 %v1494, %v62
    %v1496 = vmul.f32 %v1494, %v63
    %v1497 = vmul.f32 %v1494, 0.0
    %1501 = vrot.lane.b32.xlu0 %v1495, 64
    %v1502 = vpop.permute.xlu0 %1501
    %1503 = vrot.lane.b32.xlu0 %v1496, 64
    %v1504 = vpop.permute.xlu0 %1503
    %1505 = vrot.lane.b32.xlu0 %v1497, 64
    %v1506 = vpop.permute.xlu0 %1505
    %v1507 = vsel %vm161, %v1502, %v1504
    %v1508 = vsel %vm161, %v1504, %v1506
    %v1512 = vadd.f32 %v1490, %v1502
    %v1513 = vadd.f32 %v1491, %v1507
    %v1514 = vadd.f32 %v1492, %v1508
    %s1515 = sld [smem:[#allocation7 + $0x58]]
    %v1516 = vstv %s1515
    %v1517 = vmul.f32 %v1516, %v62
    %v1518 = vmul.f32 %v1516, %v63
    %v1519 = vmul.f32 %v1516, 0.0
    %1523 = vrot.lane.b32.xlu0 %v1517, 48
    %v1524 = vpop.permute.xlu0 %1523
    %1525 = vrot.lane.b32.xlu0 %v1518, 48
    %v1526 = vpop.permute.xlu0 %1525
    %1527 = vrot.lane.b32.xlu0 %v1519, 48
    %v1528 = vpop.permute.xlu0 %1527
    %v1529 = vsel %vm184, %v1524, %v1526
    %v1530 = vsel %vm184, %v1526, %v1528
    %v1534 = vadd.f32 %v1512, %v1524
    %v1535 = vadd.f32 %v1513, %v1529
    %v1536 = vadd.f32 %v1514, %v1530
    %s1537 = sld [smem:[#allocation7 + $0x5f]]
    %v1538 = vstv %s1537
    %v1539 = vmul.f32 %v1538, %v62
    %v1540 = vmul.f32 %v1538, %v63
    %v1541 = vmul.f32 %v1538, 0.0
    %1545 = vrot.lane.b32.xlu0 %v1539, 32
    %v1546 = vpop.permute.xlu0 %1545
    %1547 = vrot.lane.b32.xlu0 %v1540, 32
    %v1548 = vpop.permute.xlu0 %1547
    %1549 = vrot.lane.b32.xlu0 %v1541, 32
    %v1550 = vpop.permute.xlu0 %1549
    %v1551 = vsel %vm207, %v1546, %v1548
    %v1552 = vsel %vm207, %v1548, %v1550
    %v1556 = vadd.f32 %v1534, %v1546
    %v1557 = vadd.f32 %v1535, %v1551
    %v1558 = vadd.f32 %v1536, %v1552
    %v1559 = vadd.s32 %v69, 1
    %v1560 = vadd.s32 %v70, 1
    %vm1561 = vcmp.ge.s32.totalorder %v1559, 0
    %vm1562 = vcmp.ge.s32.totalorder %v1560, 0
    %vm1563 = vcmp.lt.s32.totalorder %v1559, 16
    %vm1564 = vcmp.lt.s32.totalorder %v1560, 16
    %vm1565 = vmand %vm1561, %vm1563
    %vm1566 = vmand %vm1562, %vm1564
    %v1567 = vsel %vm1565, 1, 0
    %v1568 = vsel %vm1566, 1, 0
    %vm1569 = vcmp.eq.s32.totalorder %v1567, 1
    %vm1570 = vcmp.eq.s32.totalorder %v1568, 1
    %1574 = vrot.lane.b32.xlu0 %v1556, 47
    %v1575 = vpop.permute.xlu0 %1574
    %1576 = vrot.lane.b32.xlu0 %v1557, 47
    %v1577 = vpop.permute.xlu0 %1576
    %1578 = vrot.lane.b32.xlu0 %v1558, 47
    %v1579 = vpop.permute.xlu0 %1578
    %vm1580 = vcmask 384000
    %v1581 = vsel %vm1580, %v1575, %v1577
    %v1582 = vsel %vm1580, %v1577, %v1579
    %v1585 = vsel %vm1569, %v1581, 0.0
    %v1586 = vsel %vm1570, %v1582, 0.0
    %v1587 = vadd.f32 %v1280, %v1585
    %v1588 = vadd.f32 %v1281, %v1586
    %s1589 = sld [smem:[#allocation7 + $0x5]]
    %v1590 = vstv %s1589
    %v1591 = vmul.f32 %v1590, 0.0
    %v1592 = vmul.f32 %v1590, %v56
    %v1593 = vmul.f32 %v1590, %v57
    %s1594 = sld [smem:[#allocation7 + $0xc]]
    %v1595 = vstv %s1594
    %v1596 = vmul.f32 %v1595, 0.0
    %v1597 = vmul.f32 %v1595, %v56
    %v1598 = vmul.f32 %v1595, %v57
    %1602 = vrot.lane.b32.xlu0 %v1596, 112
    %v1603 = vpop.permute.xlu0 %1602
    %1604 = vrot.lane.b32.xlu0 %v1597, 112
    %v1605 = vpop.permute.xlu0 %1604
    %1606 = vrot.lane.b32.xlu0 %v1598, 112
    %v1607 = vpop.permute.xlu0 %1606
    %v1608 = vsel %vm92, %v1603, %v1605
    %v1609 = vsel %vm92, %v1605, %v1607
    %v1613 = vadd.f32 %v1591, %v1608
    %v1614 = vadd.f32 %v1592, %v1609
    %v1615 = vadd.f32 %v1593, %v1607
    %s1616 = sld [smem:[#allocation7 + $0x13]]
    %v1617 = vstv %s1616
    %v1618 = vmul.f32 %v1617, 0.0
    %v1619 = vmul.f32 %v1617, %v56
    %v1620 = vmul.f32 %v1617, %v57
    %1624 = vrot.lane.b32.xlu0 %v1618, 96
    %v1625 = vpop.permute.xlu0 %1624
    %1626 = vrot.lane.b32.xlu0 %v1619, 96
    %v1627 = vpop.permute.xlu0 %1626
    %1628 = vrot.lane.b32.xlu0 %v1620, 96
    %v1629 = vpop.permute.xlu0 %1628
    %v1630 = vsel %vm115, %v1625, %v1627
    %v1631 = vsel %vm115, %v1627, %v1629
    %v1635 = vadd.f32 %v1613, %v1630
    %v1636 = vadd.f32 %v1614, %v1631
    %v1637 = vadd.f32 %v1615, %v1629
    %s1638 = sld [smem:[#allocation7 + $0x1a]]
    %v1639 = vstv %s1638
    %v1640 = vmul.f32 %v1639, %v56
    %v1641 = vmul.f32 %v1639, %v57
    %v1642 = vmul.f32 %v1639, 0.0
    %1646 = vrot.lane.b32.xlu0 %v1640, 80
    %v1647 = vpop.permute.xlu0 %1646
    %1648 = vrot.lane.b32.xlu0 %v1641, 80
    %v1649 = vpop.permute.xlu0 %1648
    %1650 = vrot.lane.b32.xlu0 %v1642, 80
    %v1651 = vpop.permute.xlu0 %1650
    %v1652 = vsel %vm138, %v1647, %v1649
    %v1653 = vsel %vm138, %v1649, %v1651
    %v1657 = vadd.f32 %v1635, %v1647
    %v1658 = vadd.f32 %v1636, %v1652
    %v1659 = vadd.f32 %v1637, %v1653
    %s1660 = sld [smem:[#allocation7 + $0x21]]
    %v1661 = vstv %s1660
    %v1662 = vmul.f32 %v1661, %v56
    %v1663 = vmul.f32 %v1661, %v57
    %v1664 = vmul.f32 %v1661, 0.0
    %1668 = vrot.lane.b32.xlu0 %v1662, 64
    %v1669 = vpop.permute.xlu0 %1668
    %1670 = vrot.lane.b32.xlu0 %v1663, 64
    %v1671 = vpop.permute.xlu0 %1670
    %1672 = vrot.lane.b32.xlu0 %v1664, 64
    %v1673 = vpop.permute.xlu0 %1672
    %v1674 = vsel %vm161, %v1669, %v1671
    %v1675 = vsel %vm161, %v1671, %v1673
    %v1679 = vadd.f32 %v1657, %v1669
    %v1680 = vadd.f32 %v1658, %v1674
    %v1681 = vadd.f32 %v1659, %v1675
    %s1682 = sld [smem:[#allocation7 + $0x28]]
    %v1683 = vstv %s1682
    %v1684 = vmul.f32 %v1683, %v56
    %v1685 = vmul.f32 %v1683, %v57
    %v1686 = vmul.f32 %v1683, 0.0
    %1690 = vrot.lane.b32.xlu0 %v1684, 48
    %v1691 = vpop.permute.xlu0 %1690
    %1692 = vrot.lane.b32.xlu0 %v1685, 48
    %v1693 = vpop.permute.xlu0 %1692
    %1694 = vrot.lane.b32.xlu0 %v1686, 48
    %v1695 = vpop.permute.xlu0 %1694
    %v1696 = vsel %vm184, %v1691, %v1693
    %v1697 = vsel %vm184, %v1693, %v1695
    %v1701 = vadd.f32 %v1679, %v1691
    %v1702 = vadd.f32 %v1680, %v1696
    %v1703 = vadd.f32 %v1681, %v1697
    %s1704 = sld [smem:[#allocation7 + $0x2f]]
    %v1705 = vstv %s1704
    %v1706 = vmul.f32 %v1705, %v56
    %v1707 = vmul.f32 %v1705, %v57
    %v1708 = vmul.f32 %v1705, 0.0
    %1712 = vrot.lane.b32.xlu0 %v1706, 32
    %v1713 = vpop.permute.xlu0 %1712
    %1714 = vrot.lane.b32.xlu0 %v1707, 32
    %v1715 = vpop.permute.xlu0 %1714
    %1716 = vrot.lane.b32.xlu0 %v1708, 32
    %v1717 = vpop.permute.xlu0 %1716
    %v1718 = vsel %vm207, %v1713, %v1715
    %v1719 = vsel %vm207, %v1715, %v1717
    %v1723 = vadd.f32 %v1701, %v1713
    %v1724 = vadd.f32 %v1702, %v1718
    %v1725 = vadd.f32 %v1703, %v1719
    %s1726 = sld [smem:[#allocation7 + $0x36]]
    %v1727 = vstv %s1726
    %v1728 = vmul.f32 %v1727, 0.0
    %v1729 = vmul.f32 %v1727, %v62
    %v1730 = vmul.f32 %v1727, %v63
    %v1731 = vadd.f32 %v1723, %v1728
    %v1732 = vadd.f32 %v1724, %v1729
    %v1733 = vadd.f32 %v1725, %v1730
    %s1734 = sld [smem:[#allocation7 + $0x3d]]
    %v1735 = vstv %s1734
    %v1736 = vmul.f32 %v1735, 0.0
    %v1737 = vmul.f32 %v1735, %v62
    %v1738 = vmul.f32 %v1735, %v63
    %1742 = vrot.lane.b32.xlu0 %v1736, 112
    %v1743 = vpop.permute.xlu0 %1742
    %1744 = vrot.lane.b32.xlu0 %v1737, 112
    %v1745 = vpop.permute.xlu0 %1744
    %1746 = vrot.lane.b32.xlu0 %v1738, 112
    %v1747 = vpop.permute.xlu0 %1746
    %v1748 = vsel %vm92, %v1743, %v1745
    %v1749 = vsel %vm92, %v1745, %v1747
    %v1753 = vadd.f32 %v1731, %v1748
    %v1754 = vadd.f32 %v1732, %v1749
    %v1755 = vadd.f32 %v1733, %v1747
    %s1756 = sld [smem:[#allocation7 + $0x44]]
    %v1757 = vstv %s1756
    %v1758 = vmul.f32 %v1757, 0.0
    %v1759 = vmul.f32 %v1757, %v62
    %v1760 = vmul.f32 %v1757, %v63
    %1764 = vrot.lane.b32.xlu0 %v1758, 96
    %v1765 = vpop.permute.xlu0 %1764
    %1766 = vrot.lane.b32.xlu0 %v1759, 96
    %v1767 = vpop.permute.xlu0 %1766
    %1768 = vrot.lane.b32.xlu0 %v1760, 96
    %v1769 = vpop.permute.xlu0 %1768
    %v1770 = vsel %vm115, %v1765, %v1767
    %v1771 = vsel %vm115, %v1767, %v1769
    %v1775 = vadd.f32 %v1753, %v1770
    %v1776 = vadd.f32 %v1754, %v1771
    %v1777 = vadd.f32 %v1755, %v1769
    %s1778 = sld [smem:[#allocation7 + $0x4b]]
    %v1779 = vstv %s1778
    %v1780 = vmul.f32 %v1779, %v62
    %v1781 = vmul.f32 %v1779, %v63
    %v1782 = vmul.f32 %v1779, 0.0
    %1786 = vrot.lane.b32.xlu0 %v1780, 80
    %v1787 = vpop.permute.xlu0 %1786
    %1788 = vrot.lane.b32.xlu0 %v1781, 80
    %v1789 = vpop.permute.xlu0 %1788
    %1790 = vrot.lane.b32.xlu0 %v1782, 80
    %v1791 = vpop.permute.xlu0 %1790
    %v1792 = vsel %vm138, %v1787, %v1789
    %v1793 = vsel %vm138, %v1789, %v1791
    %v1797 = vadd.f32 %v1775, %v1787
    %v1798 = vadd.f32 %v1776, %v1792
    %v1799 = vadd.f32 %v1777, %v1793
    %s1800 = sld [smem:[#allocation7 + $0x52]]
    %v1801 = vstv %s1800
    %v1802 = vmul.f32 %v1801, %v62
    %v1803 = vmul.f32 %v1801, %v63
    %v1804 = vmul.f32 %v1801, 0.0
    %1808 = vrot.lane.b32.xlu0 %v1802, 64
    %v1809 = vpop.permute.xlu0 %1808
    %1810 = vrot.lane.b32.xlu0 %v1803, 64
    %v1811 = vpop.permute.xlu0 %1810
    %1812 = vrot.lane.b32.xlu0 %v1804, 64
    %v1813 = vpop.permute.xlu0 %1812
    %v1814 = vsel %vm161, %v1809, %v1811
    %v1815 = vsel %vm161, %v1811, %v1813
    %v1819 = vadd.f32 %v1797, %v1809
    %v1820 = vadd.f32 %v1798, %v1814
    %v1821 = vadd.f32 %v1799, %v1815
    %s1822 = sld [smem:[#allocation7 + $0x59]]
    %v1823 = vstv %s1822
    %v1824 = vmul.f32 %v1823, %v62
    %v1825 = vmul.f32 %v1823, %v63
    %v1826 = vmul.f32 %v1823, 0.0
    %1830 = vrot.lane.b32.xlu0 %v1824, 48
    %v1831 = vpop.permute.xlu0 %1830
    %1832 = vrot.lane.b32.xlu0 %v1825, 48
    %v1833 = vpop.permute.xlu0 %1832
    %1834 = vrot.lane.b32.xlu0 %v1826, 48
    %v1835 = vpop.permute.xlu0 %1834
    %v1836 = vsel %vm184, %v1831, %v1833
    %v1837 = vsel %vm184, %v1833, %v1835
    %v1841 = vadd.f32 %v1819, %v1831
    %v1842 = vadd.f32 %v1820, %v1836
    %v1843 = vadd.f32 %v1821, %v1837
    %s1844 = sld [smem:[#allocation7 + $0x60]]
    %v1845 = vstv %s1844
    %v1846 = vmul.f32 %v1845, %v62
    %v1847 = vmul.f32 %v1845, %v63
    %v1848 = vmul.f32 %v1845, 0.0
    %1852 = vrot.lane.b32.xlu0 %v1846, 32
    %v1853 = vpop.permute.xlu0 %1852
    %1854 = vrot.lane.b32.xlu0 %v1847, 32
    %v1855 = vpop.permute.xlu0 %1854
    %1856 = vrot.lane.b32.xlu0 %v1848, 32
    %v1857 = vpop.permute.xlu0 %1856
    %v1858 = vsel %vm207, %v1853, %v1855
    %v1859 = vsel %vm207, %v1855, %v1857
    %v1863 = vadd.f32 %v1841, %v1853
    %v1864 = vadd.f32 %v1842, %v1858
    %v1865 = vadd.f32 %v1843, %v1859
    %v1866 = vadd.s32 %v69, 2
    %v1867 = vadd.s32 %v70, 2
    %vm1868 = vcmp.ge.s32.totalorder %v1866, 0
    %vm1869 = vcmp.ge.s32.totalorder %v1867, 0
    %vm1870 = vcmp.lt.s32.totalorder %v1866, 16
    %vm1871 = vcmp.lt.s32.totalorder %v1867, 16
    %vm1872 = vmand %vm1868, %vm1870
    %vm1873 = vmand %vm1869, %vm1871
    %v1874 = vsel %vm1872, 1, 0
    %v1875 = vsel %vm1873, 1, 0
    %vm1876 = vcmp.eq.s32.totalorder %v1874, 1
    %vm1877 = vcmp.eq.s32.totalorder %v1875, 1
    %1881 = vrot.lane.b32.xlu0 %v1863, 46
    %v1882 = vpop.permute.xlu0 %1881
    %1883 = vrot.lane.b32.xlu0 %v1864, 46
    %v1884 = vpop.permute.xlu0 %1883
    %1885 = vrot.lane.b32.xlu0 %v1865, 46
    %v1886 = vpop.permute.xlu0 %1885
    %vm1887 = vcmask 375808
    %v1888 = vsel %vm1887, %v1882, %v1884
    %v1889 = vsel %vm1887, %v1884, %v1886
    %v1892 = vsel %vm1876, %v1888, 0.0
    %v1893 = vsel %vm1877, %v1889, 0.0
    %v1894 = vadd.f32 %v1587, %v1892
    %v1895 = vadd.f32 %v1588, %v1893
    %s1896 = sld [smem:[#allocation7 + $0x6]]
    %v1897 = vstv %s1896
    %v1898 = vmul.f32 %v1897, 0.0
    %v1899 = vmul.f32 %v1897, %v56
    %v1900 = vmul.f32 %v1897, %v57
    %s1901 = sld [smem:[#allocation7 + $0xd]]
    %v1902 = vstv %s1901
    %v1903 = vmul.f32 %v1902, 0.0
    %v1904 = vmul.f32 %v1902, %v56
    %v1905 = vmul.f32 %v1902, %v57
    %1909 = vrot.lane.b32.xlu0 %v1903, 112
    %v1910 = vpop.permute.xlu0 %1909
    %1911 = vrot.lane.b32.xlu0 %v1904, 112
    %v1912 = vpop.permute.xlu0 %1911
    %1913 = vrot.lane.b32.xlu0 %v1905, 112
    %v1914 = vpop.permute.xlu0 %1913
    %v1915 = vsel %vm92, %v1910, %v1912
    %v1916 = vsel %vm92, %v1912, %v1914
    %v1920 = vadd.f32 %v1898, %v1915
    %v1921 = vadd.f32 %v1899, %v1916
    %v1922 = vadd.f32 %v1900, %v1914
    %s1923 = sld [smem:[#allocation7 + $0x14]]
    %v1924 = vstv %s1923
    %v1925 = vmul.f32 %v1924, 0.0
    %v1926 = vmul.f32 %v1924, %v56
    %v1927 = vmul.f32 %v1924, %v57
    %1931 = vrot.lane.b32.xlu0 %v1925, 96
    %v1932 = vpop.permute.xlu0 %1931
    %1933 = vrot.lane.b32.xlu0 %v1926, 96
    %v1934 = vpop.permute.xlu0 %1933
    %1935 = vrot.lane.b32.xlu0 %v1927, 96
    %v1936 = vpop.permute.xlu0 %1935
    %v1937 = vsel %vm115, %v1932, %v1934
    %v1938 = vsel %vm115, %v1934, %v1936
    %v1942 = vadd.f32 %v1920, %v1937
    %v1943 = vadd.f32 %v1921, %v1938
    %v1944 = vadd.f32 %v1922, %v1936
    %s1945 = sld [smem:[#allocation7 + $0x1b]]
    %v1946 = vstv %s1945
    %v1947 = vmul.f32 %v1946, %v56
    %v1948 = vmul.f32 %v1946, %v57
    %v1949 = vmul.f32 %v1946, 0.0
    %1953 = vrot.lane.b32.xlu0 %v1947, 80
    %v1954 = vpop.permute.xlu0 %1953
    %1955 = vrot.lane.b32.xlu0 %v1948, 80
    %v1956 = vpop.permute.xlu0 %1955
    %1957 = vrot.lane.b32.xlu0 %v1949, 80
    %v1958 = vpop.permute.xlu0 %1957
    %v1959 = vsel %vm138, %v1954, %v1956
    %v1960 = vsel %vm138, %v1956, %v1958
    %v1964 = vadd.f32 %v1942, %v1954
    %v1965 = vadd.f32 %v1943, %v1959
    %v1966 = vadd.f32 %v1944, %v1960
    %s1967 = sld [smem:[#allocation7 + $0x22]]
    %v1968 = vstv %s1967
    %v1969 = vmul.f32 %v1968, %v56
    %v1970 = vmul.f32 %v1968, %v57
    %v1971 = vmul.f32 %v1968, 0.0
    %1975 = vrot.lane.b32.xlu0 %v1969, 64
    %v1976 = vpop.permute.xlu0 %1975
    %1977 = vrot.lane.b32.xlu0 %v1970, 64
    %v1978 = vpop.permute.xlu0 %1977
    %1979 = vrot.lane.b32.xlu0 %v1971, 64
    %v1980 = vpop.permute.xlu0 %1979
    %v1981 = vsel %vm161, %v1976, %v1978
    %v1982 = vsel %vm161, %v1978, %v1980
    %v1986 = vadd.f32 %v1964, %v1976
    %v1987 = vadd.f32 %v1965, %v1981
    %v1988 = vadd.f32 %v1966, %v1982
    %s1989 = sld [smem:[#allocation7 + $0x29]]
    %v1990 = vstv %s1989
    %v1991 = vmul.f32 %v1990, %v56
    %v1992 = vmul.f32 %v1990, %v57
    %v1993 = vmul.f32 %v1990, 0.0
    %1997 = vrot.lane.b32.xlu0 %v1991, 48
    %v1998 = vpop.permute.xlu0 %1997
    %1999 = vrot.lane.b32.xlu0 %v1992, 48
    %v2000 = vpop.permute.xlu0 %1999
    %2001 = vrot.lane.b32.xlu0 %v1993, 48
    %v2002 = vpop.permute.xlu0 %2001
    %v2003 = vsel %vm184, %v1998, %v2000
    %v2004 = vsel %vm184, %v2000, %v2002
    %v2008 = vadd.f32 %v1986, %v1998
    %v2009 = vadd.f32 %v1987, %v2003
    %v2010 = vadd.f32 %v1988, %v2004
    %s2011 = sld [smem:[#allocation7 + $0x30]]
    %v2012 = vstv %s2011
    %v2013 = vmul.f32 %v2012, %v56
    %v2014 = vmul.f32 %v2012, %v57
    %v2015 = vmul.f32 %v2012, 0.0
    %2019 = vrot.lane.b32.xlu0 %v2013, 32
    %v2020 = vpop.permute.xlu0 %2019
    %2021 = vrot.lane.b32.xlu0 %v2014, 32
    %v2022 = vpop.permute.xlu0 %2021
    %2023 = vrot.lane.b32.xlu0 %v2015, 32
    %v2024 = vpop.permute.xlu0 %2023
    %v2025 = vsel %vm207, %v2020, %v2022
    %v2026 = vsel %vm207, %v2022, %v2024
    %v2030 = vadd.f32 %v2008, %v2020
    %v2031 = vadd.f32 %v2009, %v2025
    %v2032 = vadd.f32 %v2010, %v2026
    %s2033 = sld [smem:[#allocation7 + $0x37]]
    %v2034 = vstv %s2033
    %v2035 = vmul.f32 %v2034, 0.0
    %v2036 = vmul.f32 %v2034, %v62
    %v2037 = vmul.f32 %v2034, %v63
    %v2038 = vadd.f32 %v2030, %v2035
    %v2039 = vadd.f32 %v2031, %v2036
    %v2040 = vadd.f32 %v2032, %v2037
    %s2041 = sld [smem:[#allocation7 + $0x3e]]
    %v2042 = vstv %s2041
    %v2043 = vmul.f32 %v2042, 0.0
    %v2044 = vmul.f32 %v2042, %v62
    %v2045 = vmul.f32 %v2042, %v63
    %2049 = vrot.lane.b32.xlu0 %v2043, 112
    %v2050 = vpop.permute.xlu0 %2049
    %2051 = vrot.lane.b32.xlu0 %v2044, 112
    %v2052 = vpop.permute.xlu0 %2051
    %2053 = vrot.lane.b32.xlu0 %v2045, 112
    %v2054 = vpop.permute.xlu0 %2053
    %v2055 = vsel %vm92, %v2050, %v2052
    %v2056 = vsel %vm92, %v2052, %v2054
    %v2060 = vadd.f32 %v2038, %v2055
    %v2061 = vadd.f32 %v2039, %v2056
    %v2062 = vadd.f32 %v2040, %v2054
    %s2063 = sld [smem:[#allocation7 + $0x45]]
    %v2064 = vstv %s2063
    %v2065 = vmul.f32 %v2064, 0.0
    %v2066 = vmul.f32 %v2064, %v62
    %v2067 = vmul.f32 %v2064, %v63
    %2071 = vrot.lane.b32.xlu0 %v2065, 96
    %v2072 = vpop.permute.xlu0 %2071
    %2073 = vrot.lane.b32.xlu0 %v2066, 96
    %v2074 = vpop.permute.xlu0 %2073
    %2075 = vrot.lane.b32.xlu0 %v2067, 96
    %v2076 = vpop.permute.xlu0 %2075
    %v2077 = vsel %vm115, %v2072, %v2074
    %v2078 = vsel %vm115, %v2074, %v2076
    %v2082 = vadd.f32 %v2060, %v2077
    %v2083 = vadd.f32 %v2061, %v2078
    %v2084 = vadd.f32 %v2062, %v2076
    %s2085 = sld [smem:[#allocation7 + $0x4c]]
    %v2086 = vstv %s2085
    %v2087 = vmul.f32 %v2086, %v62
    %v2088 = vmul.f32 %v2086, %v63
    %v2089 = vmul.f32 %v2086, 0.0
    %2093 = vrot.lane.b32.xlu0 %v2087, 80
    %v2094 = vpop.permute.xlu0 %2093
    %2095 = vrot.lane.b32.xlu0 %v2088, 80
    %v2096 = vpop.permute.xlu0 %2095
    %2097 = vrot.lane.b32.xlu0 %v2089, 80
    %v2098 = vpop.permute.xlu0 %2097
    %v2099 = vsel %vm138, %v2094, %v2096
    %v2100 = vsel %vm138, %v2096, %v2098
    %v2104 = vadd.f32 %v2082, %v2094
    %v2105 = vadd.f32 %v2083, %v2099
    %v2106 = vadd.f32 %v2084, %v2100
    %s2107 = sld [smem:[#allocation7 + $0x53]]
    %v2108 = vstv %s2107
    %v2109 = vmul.f32 %v2108, %v62
    %v2110 = vmul.f32 %v2108, %v63
    %v2111 = vmul.f32 %v2108, 0.0
    %2115 = vrot.lane.b32.xlu0 %v2109, 64
    %v2116 = vpop.permute.xlu0 %2115
    %2117 = vrot.lane.b32.xlu0 %v2110, 64
    %v2118 = vpop.permute.xlu0 %2117
    %2119 = vrot.lane.b32.xlu0 %v2111, 64
    %v2120 = vpop.permute.xlu0 %2119
    %v2121 = vsel %vm161, %v2116, %v2118
    %v2122 = vsel %vm161, %v2118, %v2120
    %v2126 = vadd.f32 %v2104, %v2116
    %v2127 = vadd.f32 %v2105, %v2121
    %v2128 = vadd.f32 %v2106, %v2122
    %s2129 = sld [smem:[#allocation7 + $0x5a]]
    %v2130 = vstv %s2129
    %v2131 = vmul.f32 %v2130, %v62
    %v2132 = vmul.f32 %v2130, %v63
    %v2133 = vmul.f32 %v2130, 0.0
    %2137 = vrot.lane.b32.xlu0 %v2131, 48
    %v2138 = vpop.permute.xlu0 %2137
    %2139 = vrot.lane.b32.xlu0 %v2132, 48
    %v2140 = vpop.permute.xlu0 %2139
    %2141 = vrot.lane.b32.xlu0 %v2133, 48
    %v2142 = vpop.permute.xlu0 %2141
    %v2143 = vsel %vm184, %v2138, %v2140
    %v2144 = vsel %vm184, %v2140, %v2142
    %v2148 = vadd.f32 %v2126, %v2138
    %v2149 = vadd.f32 %v2127, %v2143
    %v2150 = vadd.f32 %v2128, %v2144
    %s2151 = sld [smem:[#allocation7 + $0x61]]
    %v2152 = vstv %s2151
    %v2153 = vmul.f32 %v2152, %v62
    %v2154 = vmul.f32 %v2152, %v63
    %v2155 = vmul.f32 %v2152, 0.0
    %2159 = vrot.lane.b32.xlu0 %v2153, 32
    %v2160 = vpop.permute.xlu0 %2159
    %2161 = vrot.lane.b32.xlu0 %v2154, 32
    %v2162 = vpop.permute.xlu0 %2161
    %2163 = vrot.lane.b32.xlu0 %v2155, 32
    %v2164 = vpop.permute.xlu0 %2163
    %v2165 = vsel %vm207, %v2160, %v2162
    %v2166 = vsel %vm207, %v2162, %v2164
    %v2170 = vadd.f32 %v2148, %v2160
    %v2171 = vadd.f32 %v2149, %v2165
    %v2172 = vadd.f32 %v2150, %v2166
    %v2173 = vadd.s32 %v69, 3
    %v2174 = vadd.s32 %v70, 3
    %vm2175 = vcmp.ge.s32.totalorder %v2173, 0
    %vm2176 = vcmp.ge.s32.totalorder %v2174, 0
    %vm2177 = vcmp.lt.s32.totalorder %v2173, 16
    %vm2178 = vcmp.lt.s32.totalorder %v2174, 16
    %vm2179 = vmand %vm2175, %vm2177
    %vm2180 = vmand %vm2176, %vm2178
    %v2181 = vsel %vm2179, 1, 0
    %v2182 = vsel %vm2180, 1, 0
    %vm2183 = vcmp.eq.s32.totalorder %v2181, 1
    %vm2184 = vcmp.eq.s32.totalorder %v2182, 1
    %2188 = vrot.lane.b32.xlu0 %v2170, 45
    %v2189 = vpop.permute.xlu0 %2188
    %2190 = vrot.lane.b32.xlu0 %v2171, 45
    %v2191 = vpop.permute.xlu0 %2190
    %2192 = vrot.lane.b32.xlu0 %v2172, 45
    %v2193 = vpop.permute.xlu0 %2192
    %vm2194 = vcmask 367616
    %v2195 = vsel %vm2194, %v2189, %v2191
    %v2196 = vsel %vm2194, %v2191, %v2193
    %v2199 = vsel %vm2183, %v2195, 0.0
    %v2200 = vsel %vm2184, %v2196, 0.0
    %v2201 = vadd.f32 %v1894, %v2199
    %v2202 = vadd.f32 %v1895, %v2200
    %v2203 = vxor.u32 %v2201, 2147483648
    %v2204 = vxor.u32 %v2202, 2147483648
    %v2205 = vmul.f32 %v2203, 1.442695
    %v2206 = vpow.pop %v2205
    %v2207 = vmul.f32 %v2204, 1.442695
    %v2208 = vpow.pop %v2207
    %v2209 = vadd.f32 %v2206, 1.0
    %v2210 = vadd.f32 %v2208, 1.0
    %v2211 = vrcp.pop %v2209
    %v2212 = vmul.f32 %v2209, %v2211
    %v2213 = vsub.f32 1.0, %v2212
    %v2214 = vmul.f32 %v2211, %v2213
    %v2215 = vadd.f32 %v2211, %v2214
    %vm2216 = vweird.f32 %v2209
    %vm2217 = vweird.f32 %v2211
    %vm2218 = vmor %vm2216, %vm2217
    %v2219 = vsel %vm2218, %v2211, %v2215
    %v2220 = vand.u32 2147483647, %v2209
    %vm2221 = vcmp.eq.f32.partialorder %v2220, 8.507059e+37
    %v2222 = vand.u32 %v2209, 2147483648
    %v2223 = vor.u32 1.1754944e-38, %v2222
    %v2224 = vsel %vm2221, %v2223, %v2219
    %v2225 = vmul.f32 1.0, %v2224
    %v2226 = vrcp.pop %v2210
    %v2227 = vmul.f32 %v2210, %v2226
    %v2228 = vsub.f32 1.0, %v2227
    %v2229 = vmul.f32 %v2226, %v2228
    %v2230 = vadd.f32 %v2226, %v2229
    %vm2231 = vweird.f32 %v2210
    %vm2232 = vweird.f32 %v2226
    %vm2233 = vmor %vm2231, %vm2232
    %v2234 = vsel %vm2233, %v2226, %v2230
    %v2235 = vand.u32 2147483647, %v2210
    %vm2236 = vcmp.eq.f32.partialorder %v2235, 8.507059e+37
    %v2237 = vand.u32 %v2210, 2147483648
    %v2238 = vor.u32 1.1754944e-38, %v2237
    %v2239 = vsel %vm2236, %v2238, %v2234
    %v2240 = vmul.f32 1.0, %v2239
    %v2243 = vrot.slane %v2240, 6
    %vm2244 = vcmask 1041408
    %v2245 = vsel %vm2244, %v2225, %v2243
    %v2247 = vmul.f32 %v43, %v2245
    %2248 = vst [vmem:[#allocation8] sm:$0xf] %v2247
    %v2249 = vld [vmem:[#allocation3 + $0x4] sm:$0xf]
    %v2250 = vmul.f32 %v2249, %v2245
    %2251 = vst [vmem:[#allocation8 + $0x4] sm:$0xf] %v2250
    %v2252 = vld [vmem:[#allocation3 + $0x8] sm:$0xf]
    %v2253 = vmul.f32 %v2252, %v2245
    %2254 = vst [vmem:[#allocation8 + $0x8] sm:$0xf] %v2253
    %v2255 = vld [vmem:[#allocation3 + $0xc] sm:$0xf]
    %v2256 = vmul.f32 %v2255, %v2245
    %2257 = vst [vmem:[#allocation8 + $0xc] sm:$0xf] %v2256
    // Predicated region
    $region22: #{tpu_custom_call.1} parent=1 // pred_check
      _
    $region23: #{tpu_custom_call.1} parent=1 // pred_check_branch
      %2259 = sbr.rel (0) target = $region25
    $region24: #{tpu_custom_call.1} parent=1 // pred_region
      %2261 = vsyncadd [#allocation5], 0
      %s2263 = sshll.u32 [#allocation8], 4
      %s2264 = int_to_ptr.vmem [resolvable:$true] %s2263
      %s2265 = sshll.u32 %s3, 4
      %s2266 = int_to_ptr.hbm [resolvable:$true] %s2265
      %2268 = dma.vmem_to_hbm [thread:$0]  %s2264, 256, %s2266, [#allocation5]
    $region25: #{tpu_custom_call.1} parent=1 // pred_fallthru
      _
    // Predicated region
    $region26: #{tpu_custom_call.1} parent=1 // pred_check
      _
    $region27: #{tpu_custom_call.1} parent=1 // pred_check_branch
      %2270 = sbr.rel (0) target = $region29
    $region28: #{tpu_custom_call.1} parent=1 // pred_region
      %2272 = dma.done [#allocation5], 256
    $region29: #{tpu_custom_call.1} parent=1 // pred_fallthru
      _
    %2273 = vsyncpa [#allocation4], 1
    %2274 = vsyncpa [#allocation5], 1
    %2275 = vsyncpa [#allocation6], 1

</llo_original>
